<compile_context>
chip_gen: v5e
topology: v5e:2x2
jax: 0.10.0
libtpu: 0.0.40
codegen_flags: <defaults>
</compile_context>

<pallas_src>
import math

import jax
import jax.numpy as jnp
from jax import lax
from jax.experimental import pallas as pl
from jax.experimental.pallas import tpu as pltpu

# ---- problem sizes (small, consistent with the module) ----
B, S, D, H, DFF = 2, 8, 32, 4, 64
DK = D // H
EPS = 1e-6
NEG_INF = -1e9

# TODO(synk): dropout (p=0.1) is implemented as identity (inference/eval mode);
# stochastic dropout is not part of the kernel.


def _add_layernorm(x, y, gamma, beta):
    """Residual add + PyTorch-reference LayerNorm (unbiased std, /(std+eps))."""
    z = x + y
    mean = jnp.mean(z, axis=-1, keepdims=True)
    diff = z - mean
    var = jnp.sum(diff * diff, axis=-1, keepdims=True) * (1.0 / (D - 1))
    inv = pl.reciprocal(jnp.sqrt(var) + EPS, approx=False)
    return gamma * diff * inv + beta


def _encoder_layer_kernel(x_ref, m_ref, wqkv_ref, bqkv_ref, wo_ref, bo_ref,
                          g1_ref, beta1_ref, w1_ref, b1_ref, w2_ref, b2_ref,
                          g2_ref, beta2_ref, o_ref, att_ref):
    # x: (B*S, D) f32; m: (B, S) f32; att_ref: VMEM scratch (B*S, D).
    x = x_ref[...]
    m = m_ref[...]

    # ---- fused Q/K/V projection: (B*S, 3D) ----
    qkv = (jnp.dot(x, wqkv_ref[...], preferred_element_type=jnp.float32)
           + bqkv_ref[...])

    scale = 1.0 / math.sqrt(DK)

    # ---- multi-head self-attention (tiny per-(batch, head) 2-D matmuls) ----
    # At S=DK=8 the MXU is underutilised regardless; what matters is that
    # everything stays on-chip.  Static Python loops (B*H = 8 iterations).
    for b in range(B):
        r0, r1 = b * S, (b + 1) * S
        mb = m[b:b + 1, :]                         # (1, S) -> broadcast over queries
        for h in range(H):
            c0, c1 = h * DK, (h + 1) * DK
            q_bh = qkv[r0:r1, c0:c1]               # (S, DK)
            k_bh = qkv[r0:r1, D + c0:D + c1]       # (S, DK)
            v_bh = qkv[r0:r1, 2 * D + c0:2 * D + c1]

            s = lax.dot_general(q_bh, k_bh, (((1,), (1,)), ((), ())),
                                preferred_element_type=jnp.float32) * scale
            s = jnp.where(mb > 0, s, NEG_INF)
            s = s - jnp.max(s, axis=-1, keepdims=True)
            p = jnp.exp(s)
            p = p * pl.reciprocal(jnp.sum(p, axis=-1, keepdims=True), approx=False)

            att_ref[r0:r1, c0:c1] = jnp.dot(p, v_bh,
                                            preferred_element_type=jnp.float32)

    # output projection (heads already concatenated in att_ref's lane layout)
    att = (jnp.dot(att_ref[...], wo_ref[...], preferred_element_type=jnp.float32)
           + bo_ref[...])

    # sublayer 0: LayerNorm(x + attn(x))
    x1 = _add_layernorm(x, att, g1_ref[...], beta1_ref[...])

    # position-wise feed-forward (inner dropout is identity in eval mode)
    hid = (jnp.dot(x1, w1_ref[...], preferred_element_type=jnp.float32)
           + b1_ref[...])
    hid = jnp.maximum(hid, 0.0)
    ff = (jnp.dot(hid, w2_ref[...], preferred_element_type=jnp.float32)
          + b2_ref[...])

    # sublayer 1: LayerNorm(x1 + ff(x1))
    o_ref[...] = _add_layernorm(x1, ff, g2_ref[...], beta2_ref[...])


def encoder_layer(x, mask, p):
    x2d = x.reshape(B * S, D)            # fold batch into the matmul M dim
    m2d = mask.reshape(B, S)
    w_qkv = jnp.concatenate([p['wq'], p['wk'], p['wv']], axis=1)   # (D, 3D)
    b_qkv = jnp.concatenate([p['bq'], p['bk'], p['bv']], axis=1)   # (1, 3D)

    vmem = pl.BlockSpec(memory_space=pltpu.MemorySpace.VMEM)
    out2d = pl.pallas_call(
        _encoder_layer_kernel,
        out_shape=jax.ShapeDtypeStruct((B * S, D), jnp.float32),
        in_specs=[vmem] * 14,
        out_specs=vmem,
        scratch_shapes=[pltpu.VMEM((B * S, D), jnp.float32)],
    )(x2d, m2d, w_qkv, b_qkv, p['wo'], p['bo'],
      p['g1'], p['beta1'], p['w1'], p['b1'], p['w2'], p['b2'],
      p['g2'], p['beta2'])
    return out2d.reshape(B, S, D)


# ---------------- pure-JAX reference (for a sanity check) ----------------

def encoder_layer_ref(x, mask, p):
    def lin(t, w, b):
        return t @ w + b

    q, k, v = lin(x, p['wq'], p['bq']), lin(x, p['wk'], p['bk']), lin(x, p['wv'], p['bv'])

    def split(t):  # (B, S, D) -> (B, H, S, DK)
        return t.reshape(B, S, H, DK).transpose(0, 2, 1, 3)

    qh, kh, vh = split(q), split(k), split(v)
    s = jnp.einsum('bhqd,bhkd->bhqk', qh, kh) / math.sqrt(DK)
    s = jnp.where(mask[:, None, :, :] > 0, s, NEG_INF)
    p_attn = jax.nn.softmax(s, axis=-1)
    att = jnp.einsum('bhqk,bhkd->bhqd', p_attn, vh)
    att = att.transpose(0, 2, 1, 3).reshape(B, S, D)
    att = lin(att, p['wo'], p['bo'])

    def add_ln(a, y, g, bt):
        z = a + y
        mean = z.mean(-1, keepdims=True)
        std = jnp.sqrt(((z - mean) ** 2).sum(-1, keepdims=True) / (D - 1))
        return g * (z - mean) / (std + EPS) + bt

    x1 = add_ln(x, att, p['g1'], p['beta1'])
    h = jnp.maximum(lin(x1, p['w1'], p['b1']), 0.0)
    ff = lin(h, p['w2'], p['b2'])
    return add_ln(x1, ff, p['g2'], p['beta2'])


def init_params(key):
    ks = jax.random.split(key, 12)
    sc = 0.02
    f32 = jnp.float32
    return {
        'wq': sc * jax.random.normal(ks[0], (D, D), f32),
        'bq': jnp.zeros((1, D), f32),
        'wk': sc * jax.random.normal(ks[1], (D, D), f32),
        'bk': jnp.zeros((1, D), f32),
        'wv': sc * jax.random.normal(ks[2], (D, D), f32),
        'bv': jnp.zeros((1, D), f32),
        'wo': sc * jax.random.normal(ks[3], (D, D), f32),
        'bo': jnp.zeros((1, D), f32),
        'w1': sc * jax.random.normal(ks[4], (D, DFF), f32),
        'b1': jnp.zeros((1, DFF), f32),
        'w2': sc * jax.random.normal(ks[5], (DFF, D), f32),
        'b2': jnp.zeros((1, D), f32),
        'g1': jnp.ones((1, D), f32),
        'beta1': jnp.zeros((1, D), f32),
        'g2': jnp.ones((1, D), f32),
        'beta2': jnp.zeros((1, D), f32),
    }


if __name__ == "__main__":
    key = jax.random.PRNGKey(0)
    kx, kp, km = jax.random.split(key, 3)

    x = jax.random.normal(kx, (B, S, D), jnp.float32)
    # padding mask (1 = keep, 0 = masked); mask out the last 2 keys of batch 1
    mask = jnp.ones((B, 1, S), jnp.float32)
    mask = mask.at[1, 0, S - 2:].set(0.0)

    params = init_params(kp)

    out = encoder_layer(x, mask, params)
    out = jax.block_until_ready(out)
    assert out.shape == (B, S, D) and out.dtype == jnp.float32

    ref = jax.block_until_ready(encoder_layer_ref(x, mask, params))
    err = float(jnp.max(jnp.abs(out - ref)))
    assert err < 5e-2, f"max abs err vs reference: {err}"

    print("KERNEL_OK")
</pallas_src>

<mosaic_0001>
module attributes {stable_mosaic.version = 11 : i64} {
  func.func @_encoder_layer_kernel(%arg0: memref<16x32xf32, #tpu.memory_space<vmem>>, %arg1: memref<2x8xf32, #tpu.memory_space<vmem>>, %arg2: memref<32x96xf32, #tpu.memory_space<vmem>>, %arg3: memref<1x96xf32, #tpu.memory_space<vmem>>, %arg4: memref<32x32xf32, #tpu.memory_space<vmem>>, %arg5: memref<1x32xf32, #tpu.memory_space<vmem>>, %arg6: memref<1x32xf32, #tpu.memory_space<vmem>>, %arg7: memref<1x32xf32, #tpu.memory_space<vmem>>, %arg8: memref<32x64xf32, #tpu.memory_space<vmem>>, %arg9: memref<1x64xf32, #tpu.memory_space<vmem>>, %arg10: memref<64x32xf32, #tpu.memory_space<vmem>>, %arg11: memref<1x32xf32, #tpu.memory_space<vmem>>, %arg12: memref<1x32xf32, #tpu.memory_space<vmem>>, %arg13: memref<1x32xf32, #tpu.memory_space<vmem>>, %arg14: memref<16x32xf32, #tpu.memory_space<vmem>>, %arg15: memref<16x32xf32, #tpu.memory_space<vmem>>) attributes {dimension_semantics = [], scalar_prefetch = 0 : i64, scratch_operands = 1 : i64, tpu.core_type = #tpu.core_type<tc>} {
    %c0 = arith.constant 0 : index
    %c0_0 = arith.constant 0 : index
    %0 = vector.load %arg0[%c0, %c0_0] : memref<16x32xf32, #tpu.memory_space<vmem>>, vector<16x32xf32>
    %c0_1 = arith.constant 0 : index
    %c0_2 = arith.constant 0 : index
    %1 = vector.load %arg1[%c0_1, %c0_2] : memref<2x8xf32, #tpu.memory_space<vmem>>, vector<2x8xf32>
    %c0_3 = arith.constant 0 : index
    %c0_4 = arith.constant 0 : index
    %2 = vector.load %arg2[%c0_3, %c0_4] : memref<32x96xf32, #tpu.memory_space<vmem>>, vector<32x96xf32>
    %cst = arith.constant dense<0.000000e+00> : vector<16x96xf32>
    %3 = tpu.matmul %0, %2, %cst {dimension_numbers = #tpu.dot_dimension_numbers<[1], [0], [0], [1], [0, 0, 1, 1], [], []>} : vector<16x32xf32>, vector<32x96xf32>, vector<16x96xf32> -> vector<16x96xf32>
    %c0_5 = arith.constant 0 : index
    %c0_6 = arith.constant 0 : index
    %4 = vector.load %arg3[%c0_5, %c0_6] : memref<1x96xf32, #tpu.memory_space<vmem>>, vector<1x96xf32>
    %5 = vector.broadcast %4 : vector<1x96xf32> to vector<16x96xf32>
    %6 = arith.addf %3, %5 : vector<16x96xf32>
    %7 = vector.extract_strided_slice %1 {offsets = [0, 0], sizes = [1, 8], strides = [1, 1]} : vector<2x8xf32> to vector<1x8xf32>
    %8 = vector.extract_strided_slice %6 {offsets = [0, 0], sizes = [8, 8], strides = [1, 1]} : vector<16x96xf32> to vector<8x8xf32>
    %9 = vector.extract_strided_slice %6 {offsets = [0, 32], sizes = [8, 8], strides = [1, 1]} : vector<16x96xf32> to vector<8x8xf32>
    %10 = vector.extract_strided_slice %6 {offsets = [0, 64], sizes = [8, 8], strides = [1, 1]} : vector<16x96xf32> to vector<8x8xf32>
    %cst_7 = arith.constant dense<0.000000e+00> : vector<8x8xf32>
    %11 = tpu.matmul %8, %9, %cst_7 {dimension_numbers = #tpu.dot_dimension_numbers<[1], [1], [0], [0], [0, 0, 1, 0], [], []>} : vector<8x8xf32>, vector<8x8xf32>, vector<8x8xf32> -> vector<8x8xf32>
    %cst_8 = arith.constant 0.353553385 : f32
    %12 = vector.broadcast %cst_8 : f32 to vector<8x8xf32>
    %13 = arith.mulf %11, %12 : vector<8x8xf32>
    %cst_9 = arith.constant 0.000000e+00 : f32
    %14 = vector.broadcast %cst_9 : f32 to vector<1x8xf32>
    %15 = arith.cmpf ogt, %7, %14 : vector<1x8xf32>
    %cst_10 = arith.constant -1.000000e+09 : f32
    %16 = vector.shape_cast %15 : vector<1x8xi1> to vector<1x8xi1>
    %17 = vector.broadcast %16 : vector<1x8xi1> to vector<8x8xi1>
    %18 = vector.broadcast %cst_10 : f32 to vector<8x8xf32>
    %19 = arith.select %17, %13, %18 : vector<8x8xi1>, vector<8x8xf32>
    %cst_11 = arith.constant dense<0xFF800000> : vector<8xf32>
    %20 = vector.multi_reduction <maximumf>, %19, %cst_11 [1] : vector<8x8xf32> to vector<8xf32>
    %21 = vector.shape_cast %20 : vector<8xf32> to vector<8x1xf32>
    %22 = vector.broadcast %21 : vector<8x1xf32> to vector<8x8xf32>
    %23 = arith.subf %19, %22 : vector<8x8xf32>
    %24 = math.exp %23 : vector<8x8xf32>
    %cst_12 = arith.constant dense<0.000000e+00> : vector<8xf32>
    %25 = vector.multi_reduction <add>, %24, %cst_12 [1] : vector<8x8xf32> to vector<8xf32>
    %26 = vector.shape_cast %25 : vector<8xf32> to vector<8x1xf32>
    %27 = tpu.reciprocal %26 : vector<8x1xf32> -> vector<8x1xf32>
    %28 = vector.broadcast %27 : vector<8x1xf32> to vector<8x8xf32>
    %29 = arith.mulf %24, %28 : vector<8x8xf32>
    %cst_13 = arith.constant dense<0.000000e+00> : vector<8x8xf32>
    %30 = tpu.matmul %29, %10, %cst_13 {dimension_numbers = #tpu.dot_dimension_numbers<[1], [0], [0], [1], [0, 0, 1, 1], [], []>} : vector<8x8xf32>, vector<8x8xf32>, vector<8x8xf32> -> vector<8x8xf32>
    %c0_14 = arith.constant 0 : index
    %c0_15 = arith.constant 0 : index
    %31 = vector.load %arg15[%c0_14, %c0_15] : memref<16x32xf32, #tpu.memory_space<vmem>>, vector<8x8xf32>
    tpu.vector_store %arg15[%c0_14, %c0_15], %30 {strides = array<i32>} : memref<16x32xf32, #tpu.memory_space<vmem>>, vector<8x8xf32>,
    %32 = vector.extract_strided_slice %6 {offsets = [0, 8], sizes = [8, 8], strides = [1, 1]} : vector<16x96xf32> to vector<8x8xf32>
    %33 = vector.extract_strided_slice %6 {offsets = [0, 40], sizes = [8, 8], strides = [1, 1]} : vector<16x96xf32> to vector<8x8xf32>
    %34 = vector.extract_strided_slice %6 {offsets = [0, 72], sizes = [8, 8], strides = [1, 1]} : vector<16x96xf32> to vector<8x8xf32>
    %cst_16 = arith.constant dense<0.000000e+00> : vector<8x8xf32>
    %35 = tpu.matmul %32, %33, %cst_16 {dimension_numbers = #tpu.dot_dimension_numbers<[1], [1], [0], [0], [0, 0, 1, 0], [], []>} : vector<8x8xf32>, vector<8x8xf32>, vector<8x8xf32> -> vector<8x8xf32>
    %cst_17 = arith.constant 0.353553385 : f32
    %36 = vector.broadcast %cst_17 : f32 to vector<8x8xf32>
    %37 = arith.mulf %35, %36 : vector<8x8xf32>
    %cst_18 = arith.constant 0.000000e+00 : f32
    %38 = vector.broadcast %cst_18 : f32 to vector<1x8xf32>
    %39 = arith.cmpf ogt, %7, %38 : vector<1x8xf32>
    %cst_19 = arith.constant -1.000000e+09 : f32
    %40 = vector.shape_cast %39 : vector<1x8xi1> to vector<1x8xi1>
    %41 = vector.broadcast %40 : vector<1x8xi1> to vector<8x8xi1>
    %42 = vector.broadcast %cst_19 : f32 to vector<8x8xf32>
    %43 = arith.select %41, %37, %42 : vector<8x8xi1>, vector<8x8xf32>
    %cst_20 = arith.constant dense<0xFF800000> : vector<8xf32>
    %44 = vector.multi_reduction <maximumf>, %43, %cst_20 [1] : vector<8x8xf32> to vector<8xf32>
    %45 = vector.shape_cast %44 : vector<8xf32> to vector<8x1xf32>
    %46 = vector.broadcast %45 : vector<8x1xf32> to vector<8x8xf32>
    %47 = arith.subf %43, %46 : vector<8x8xf32>
    %48 = math.exp %47 : vector<8x8xf32>
    %cst_21 = arith.constant dense<0.000000e+00> : vector<8xf32>
    %49 = vector.multi_reduction <add>, %48, %cst_21 [1] : vector<8x8xf32> to vector<8xf32>
    %50 = vector.shape_cast %49 : vector<8xf32> to vector<8x1xf32>
    %51 = tpu.reciprocal %50 : vector<8x1xf32> -> vector<8x1xf32>
    %52 = vector.broadcast %51 : vector<8x1xf32> to vector<8x8xf32>
    %53 = arith.mulf %48, %52 : vector<8x8xf32>
    %cst_22 = arith.constant dense<0.000000e+00> : vector<8x8xf32>
    %54 = tpu.matmul %53, %34, %cst_22 {dimension_numbers = #tpu.dot_dimension_numbers<[1], [0], [0], [1], [0, 0, 1, 1], [], []>} : vector<8x8xf32>, vector<8x8xf32>, vector<8x8xf32> -> vector<8x8xf32>
    %c0_23 = arith.constant 0 : index
    %c8 = arith.constant 8 : index
    %55 = vector.load %arg15[%c0_23, %c8] : memref<16x32xf32, #tpu.memory_space<vmem>>, vector<8x8xf32>
    tpu.vector_store %arg15[%c0_23, %c8], %54 {strides = array<i32>} : memref<16x32xf32, #tpu.memory_space<vmem>>, vector<8x8xf32>,
    %56 = vector.extract_strided_slice %6 {offsets = [0, 16], sizes = [8, 8], strides = [1, 1]} : vector<16x96xf32> to vector<8x8xf32>
    %57 = vector.extract_strided_slice %6 {offsets = [0, 48], sizes = [8, 8], strides = [1, 1]} : vector<16x96xf32> to vector<8x8xf32>
    %58 = vector.extract_strided_slice %6 {offsets = [0, 80], sizes = [8, 8], strides = [1, 1]} : vector<16x96xf32> to vector<8x8xf32>
    %cst_24 = arith.constant dense<0.000000e+00> : vector<8x8xf32>
    %59 = tpu.matmul %56, %57, %cst_24 {dimension_numbers = #tpu.dot_dimension_numbers<[1], [1], [0], [0], [0, 0, 1, 0], [], []>} : vector<8x8xf32>, vector<8x8xf32>, vector<8x8xf32> -> vector<8x8xf32>
    %cst_25 = arith.constant 0.353553385 : f32
    %60 = vector.broadcast %cst_25 : f32 to vector<8x8xf32>
    %61 = arith.mulf %59, %60 : vector<8x8xf32>
    %cst_26 = arith.constant 0.000000e+00 : f32
    %62 = vector.broadcast %cst_26 : f32 to vector<1x8xf32>
    %63 = arith.cmpf ogt, %7, %62 : vector<1x8xf32>
    %cst_27 = arith.constant -1.000000e+09 : f32
    %64 = vector.shape_cast %63 : vector<1x8xi1> to vector<1x8xi1>
    %65 = vector.broadcast %64 : vector<1x8xi1> to vector<8x8xi1>
    %66 = vector.broadcast %cst_27 : f32 to vector<8x8xf32>
    %67 = arith.select %65, %61, %66 : vector<8x8xi1>, vector<8x8xf32>
    %cst_28 = arith.constant dense<0xFF800000> : vector<8xf32>
    %68 = vector.multi_reduction <maximumf>, %67, %cst_28 [1] : vector<8x8xf32> to vector<8xf32>
    %69 = vector.shape_cast %68 : vector<8xf32> to vector<8x1xf32>
    %70 = vector.broadcast %69 : vector<8x1xf32> to vector<8x8xf32>
    %71 = arith.subf %67, %70 : vector<8x8xf32>
    %72 = math.exp %71 : vector<8x8xf32>
    %cst_29 = arith.constant dense<0.000000e+00> : vector<8xf32>
    %73 = vector.multi_reduction <add>, %72, %cst_29 [1] : vector<8x8xf32> to vector<8xf32>
    %74 = vector.shape_cast %73 : vector<8xf32> to vector<8x1xf32>
    %75 = tpu.reciprocal %74 : vector<8x1xf32> -> vector<8x1xf32>
    %76 = vector.broadcast %75 : vector<8x1xf32> to vector<8x8xf32>
    %77 = arith.mulf %72, %76 : vector<8x8xf32>
    %cst_30 = arith.constant dense<0.000000e+00> : vector<8x8xf32>
    %78 = tpu.matmul %77, %58, %cst_30 {dimension_numbers = #tpu.dot_dimension_numbers<[1], [0], [0], [1], [0, 0, 1, 1], [], []>} : vector<8x8xf32>, vector<8x8xf32>, vector<8x8xf32> -> vector<8x8xf32>
    %c0_31 = arith.constant 0 : index
    %c16 = arith.constant 16 : index
    %79 = vector.load %arg15[%c0_31, %c16] : memref<16x32xf32, #tpu.memory_space<vmem>>, vector<8x8xf32>
    tpu.vector_store %arg15[%c0_31, %c16], %78 {strides = array<i32>} : memref<16x32xf32, #tpu.memory_space<vmem>>, vector<8x8xf32>,
    %80 = vector.extract_strided_slice %6 {offsets = [0, 24], sizes = [8, 8], strides = [1, 1]} : vector<16x96xf32> to vector<8x8xf32>
    %81 = vector.extract_strided_slice %6 {offsets = [0, 56], sizes = [8, 8], strides = [1, 1]} : vector<16x96xf32> to vector<8x8xf32>
    %82 = vector.extract_strided_slice %6 {offsets = [0, 88], sizes = [8, 8], strides = [1, 1]} : vector<16x96xf32> to vector<8x8xf32>
    %cst_32 = arith.constant dense<0.000000e+00> : vector<8x8xf32>
    %83 = tpu.matmul %80, %81, %cst_32 {dimension_numbers = #tpu.dot_dimension_numbers<[1], [1], [0], [0], [0, 0, 1, 0], [], []>} : vector<8x8xf32>, vector<8x8xf32>, vector<8x8xf32> -> vector<8x8xf32>
    %cst_33 = arith.constant 0.353553385 : f32
    %84 = vector.broadcast %cst_33 : f32 to vector<8x8xf32>
    %85 = arith.mulf %83, %84 : vector<8x8xf32>
    %cst_34 = arith.constant 0.000000e+00 : f32
    %86 = vector.broadcast %cst_34 : f32 to vector<1x8xf32>
    %87 = arith.cmpf ogt, %7, %86 : vector<1x8xf32>
    %cst_35 = arith.constant -1.000000e+09 : f32
    %88 = vector.shape_cast %87 : vector<1x8xi1> to vector<1x8xi1>
    %89 = vector.broadcast %88 : vector<1x8xi1> to vector<8x8xi1>
    %90 = vector.broadcast %cst_35 : f32 to vector<8x8xf32>
    %91 = arith.select %89, %85, %90 : vector<8x8xi1>, vector<8x8xf32>
    %cst_36 = arith.constant dense<0xFF800000> : vector<8xf32>
    %92 = vector.multi_reduction <maximumf>, %91, %cst_36 [1] : vector<8x8xf32> to vector<8xf32>
    %93 = vector.shape_cast %92 : vector<8xf32> to vector<8x1xf32>
    %94 = vector.broadcast %93 : vector<8x1xf32> to vector<8x8xf32>
    %95 = arith.subf %91, %94 : vector<8x8xf32>
    %96 = math.exp %95 : vector<8x8xf32>
    %cst_37 = arith.constant dense<0.000000e+00> : vector<8xf32>
    %97 = vector.multi_reduction <add>, %96, %cst_37 [1] : vector<8x8xf32> to vector<8xf32>
    %98 = vector.shape_cast %97 : vector<8xf32> to vector<8x1xf32>
    %99 = tpu.reciprocal %98 : vector<8x1xf32> -> vector<8x1xf32>
    %100 = vector.broadcast %99 : vector<8x1xf32> to vector<8x8xf32>
    %101 = arith.mulf %96, %100 : vector<8x8xf32>
    %cst_38 = arith.constant dense<0.000000e+00> : vector<8x8xf32>
    %102 = tpu.matmul %101, %82, %cst_38 {dimension_numbers = #tpu.dot_dimension_numbers<[1], [0], [0], [1], [0, 0, 1, 1], [], []>} : vector<8x8xf32>, vector<8x8xf32>, vector<8x8xf32> -> vector<8x8xf32>
    %c0_39 = arith.constant 0 : index
    %c24 = arith.constant 24 : index
    %103 = vector.load %arg15[%c0_39, %c24] : memref<16x32xf32, #tpu.memory_space<vmem>>, vector<8x8xf32>
    tpu.vector_store %arg15[%c0_39, %c24], %102 {strides = array<i32>} : memref<16x32xf32, #tpu.memory_space<vmem>>, vector<8x8xf32>,
    %104 = vector.extract_strided_slice %1 {offsets = [1, 0], sizes = [1, 8], strides = [1, 1]} : vector<2x8xf32> to vector<1x8xf32>
    %105 = vector.extract_strided_slice %6 {offsets = [8, 0], sizes = [8, 8], strides = [1, 1]} : vector<16x96xf32> to vector<8x8xf32>
    %106 = vector.extract_strided_slice %6 {offsets = [8, 32], sizes = [8, 8], strides = [1, 1]} : vector<16x96xf32> to vector<8x8xf32>
    %107 = vector.extract_strided_slice %6 {offsets = [8, 64], sizes = [8, 8], strides = [1, 1]} : vector<16x96xf32> to vector<8x8xf32>
    %cst_40 = arith.constant dense<0.000000e+00> : vector<8x8xf32>
    %108 = tpu.matmul %105, %106, %cst_40 {dimension_numbers = #tpu.dot_dimension_numbers<[1], [1], [0], [0], [0, 0, 1, 0], [], []>} : vector<8x8xf32>, vector<8x8xf32>, vector<8x8xf32> -> vector<8x8xf32>
    %cst_41 = arith.constant 0.353553385 : f32
    %109 = vector.broadcast %cst_41 : f32 to vector<8x8xf32>
    %110 = arith.mulf %108, %109 : vector<8x8xf32>
    %cst_42 = arith.constant 0.000000e+00 : f32
    %111 = vector.broadcast %cst_42 : f32 to vector<1x8xf32>
    %112 = arith.cmpf ogt, %104, %111 : vector<1x8xf32>
    %cst_43 = arith.constant -1.000000e+09 : f32
    %113 = vector.shape_cast %112 : vector<1x8xi1> to vector<1x8xi1>
    %114 = vector.broadcast %113 : vector<1x8xi1> to vector<8x8xi1>
    %115 = vector.broadcast %cst_43 : f32 to vector<8x8xf32>
    %116 = arith.select %114, %110, %115 : vector<8x8xi1>, vector<8x8xf32>
    %cst_44 = arith.constant dense<0xFF800000> : vector<8xf32>
    %117 = vector.multi_reduction <maximumf>, %116, %cst_44 [1] : vector<8x8xf32> to vector<8xf32>
    %118 = vector.shape_cast %117 : vector<8xf32> to vector<8x1xf32>
    %119 = vector.broadcast %118 : vector<8x1xf32> to vector<8x8xf32>
    %120 = arith.subf %116, %119 : vector<8x8xf32>
    %121 = math.exp %120 : vector<8x8xf32>
    %cst_45 = arith.constant dense<0.000000e+00> : vector<8xf32>
    %122 = vector.multi_reduction <add>, %121, %cst_45 [1] : vector<8x8xf32> to vector<8xf32>
    %123 = vector.shape_cast %122 : vector<8xf32> to vector<8x1xf32>
    %124 = tpu.reciprocal %123 : vector<8x1xf32> -> vector<8x1xf32>
    %125 = vector.broadcast %124 : vector<8x1xf32> to vector<8x8xf32>
    %126 = arith.mulf %121, %125 : vector<8x8xf32>
    %cst_46 = arith.constant dense<0.000000e+00> : vector<8x8xf32>
    %127 = tpu.matmul %126, %107, %cst_46 {dimension_numbers = #tpu.dot_dimension_numbers<[1], [0], [0], [1], [0, 0, 1, 1], [], []>} : vector<8x8xf32>, vector<8x8xf32>, vector<8x8xf32> -> vector<8x8xf32>
    %c8_47 = arith.constant 8 : index
    %c0_48 = arith.constant 0 : index
    %128 = vector.load %arg15[%c8_47, %c0_48] : memref<16x32xf32, #tpu.memory_space<vmem>>, vector<8x8xf32>
    tpu.vector_store %arg15[%c8_47, %c0_48], %127 {strides = array<i32>} : memref<16x32xf32, #tpu.memory_space<vmem>>, vector<8x8xf32>,
    %129 = vector.extract_strided_slice %6 {offsets = [8, 8], sizes = [8, 8], strides = [1, 1]} : vector<16x96xf32> to vector<8x8xf32>
    %130 = vector.extract_strided_slice %6 {offsets = [8, 40], sizes = [8, 8], strides = [1, 1]} : vector<16x96xf32> to vector<8x8xf32>
    %131 = vector.extract_strided_slice %6 {offsets = [8, 72], sizes = [8, 8], strides = [1, 1]} : vector<16x96xf32> to vector<8x8xf32>
    %cst_49 = arith.constant dense<0.000000e+00> : vector<8x8xf32>
    %132 = tpu.matmul %129, %130, %cst_49 {dimension_numbers = #tpu.dot_dimension_numbers<[1], [1], [0], [0], [0, 0, 1, 0], [], []>} : vector<8x8xf32>, vector<8x8xf32>, vector<8x8xf32> -> vector<8x8xf32>
    %cst_50 = arith.constant 0.353553385 : f32
    %133 = vector.broadcast %cst_50 : f32 to vector<8x8xf32>
    %134 = arith.mulf %132, %133 : vector<8x8xf32>
    %cst_51 = arith.constant 0.000000e+00 : f32
    %135 = vector.broadcast %cst_51 : f32 to vector<1x8xf32>
    %136 = arith.cmpf ogt, %104, %135 : vector<1x8xf32>
    %cst_52 = arith.constant -1.000000e+09 : f32
    %137 = vector.shape_cast %136 : vector<1x8xi1> to vector<1x8xi1>
    %138 = vector.broadcast %137 : vector<1x8xi1> to vector<8x8xi1>
    %139 = vector.broadcast %cst_52 : f32 to vector<8x8xf32>
    %140 = arith.select %138, %134, %139 : vector<8x8xi1>, vector<8x8xf32>
    %cst_53 = arith.constant dense<0xFF800000> : vector<8xf32>
    %141 = vector.multi_reduction <maximumf>, %140, %cst_53 [1] : vector<8x8xf32> to vector<8xf32>
    %142 = vector.shape_cast %141 : vector<8xf32> to vector<8x1xf32>
    %143 = vector.broadcast %142 : vector<8x1xf32> to vector<8x8xf32>
    %144 = arith.subf %140, %143 : vector<8x8xf32>
    %145 = math.exp %144 : vector<8x8xf32>
    %cst_54 = arith.constant dense<0.000000e+00> : vector<8xf32>
    %146 = vector.multi_reduction <add>, %145, %cst_54 [1] : vector<8x8xf32> to vector<8xf32>
    %147 = vector.shape_cast %146 : vector<8xf32> to vector<8x1xf32>
    %148 = tpu.reciprocal %147 : vector<8x1xf32> -> vector<8x1xf32>
    %149 = vector.broadcast %148 : vector<8x1xf32> to vector<8x8xf32>
    %150 = arith.mulf %145, %149 : vector<8x8xf32>
    %cst_55 = arith.constant dense<0.000000e+00> : vector<8x8xf32>
    %151 = tpu.matmul %150, %131, %cst_55 {dimension_numbers = #tpu.dot_dimension_numbers<[1], [0], [0], [1], [0, 0, 1, 1], [], []>} : vector<8x8xf32>, vector<8x8xf32>, vector<8x8xf32> -> vector<8x8xf32>
    %c8_56 = arith.constant 8 : index
    %c8_57 = arith.constant 8 : index
    %152 = vector.load %arg15[%c8_56, %c8_57] : memref<16x32xf32, #tpu.memory_space<vmem>>, vector<8x8xf32>
    tpu.vector_store %arg15[%c8_56, %c8_57], %151 {strides = array<i32>} : memref<16x32xf32, #tpu.memory_space<vmem>>, vector<8x8xf32>,
    %153 = vector.extract_strided_slice %6 {offsets = [8, 16], sizes = [8, 8], strides = [1, 1]} : vector<16x96xf32> to vector<8x8xf32>
    %154 = vector.extract_strided_slice %6 {offsets = [8, 48], sizes = [8, 8], strides = [1, 1]} : vector<16x96xf32> to vector<8x8xf32>
    %155 = vector.extract_strided_slice %6 {offsets = [8, 80], sizes = [8, 8], strides = [1, 1]} : vector<16x96xf32> to vector<8x8xf32>
    %cst_58 = arith.constant dense<0.000000e+00> : vector<8x8xf32>
    %156 = tpu.matmul %153, %154, %cst_58 {dimension_numbers = #tpu.dot_dimension_numbers<[1], [1], [0], [0], [0, 0, 1, 0], [], []>} : vector<8x8xf32>, vector<8x8xf32>, vector<8x8xf32> -> vector<8x8xf32>
    %cst_59 = arith.constant 0.353553385 : f32
    %157 = vector.broadcast %cst_59 : f32 to vector<8x8xf32>
    %158 = arith.mulf %156, %157 : vector<8x8xf32>
    %cst_60 = arith.constant 0.000000e+00 : f32
    %159 = vector.broadcast %cst_60 : f32 to vector<1x8xf32>
    %160 = arith.cmpf ogt, %104, %159 : vector<1x8xf32>
    %cst_61 = arith.constant -1.000000e+09 : f32
    %161 = vector.shape_cast %160 : vector<1x8xi1> to vector<1x8xi1>
    %162 = vector.broadcast %161 : vector<1x8xi1> to vector<8x8xi1>
    %163 = vector.broadcast %cst_61 : f32 to vector<8x8xf32>
    %164 = arith.select %162, %158, %163 : vector<8x8xi1>, vector<8x8xf32>
    %cst_62 = arith.constant dense<0xFF800000> : vector<8xf32>
    %165 = vector.multi_reduction <maximumf>, %164, %cst_62 [1] : vector<8x8xf32> to vector<8xf32>
    %166 = vector.shape_cast %165 : vector<8xf32> to vector<8x1xf32>
    %167 = vector.broadcast %166 : vector<8x1xf32> to vector<8x8xf32>
    %168 = arith.subf %164, %167 : vector<8x8xf32>
    %169 = math.exp %168 : vector<8x8xf32>
    %cst_63 = arith.constant dense<0.000000e+00> : vector<8xf32>
    %170 = vector.multi_reduction <add>, %169, %cst_63 [1] : vector<8x8xf32> to vector<8xf32>
    %171 = vector.shape_cast %170 : vector<8xf32> to vector<8x1xf32>
    %172 = tpu.reciprocal %171 : vector<8x1xf32> -> vector<8x1xf32>
    %173 = vector.broadcast %172 : vector<8x1xf32> to vector<8x8xf32>
    %174 = arith.mulf %169, %173 : vector<8x8xf32>
    %cst_64 = arith.constant dense<0.000000e+00> : vector<8x8xf32>
    %175 = tpu.matmul %174, %155, %cst_64 {dimension_numbers = #tpu.dot_dimension_numbers<[1], [0], [0], [1], [0, 0, 1, 1], [], []>} : vector<8x8xf32>, vector<8x8xf32>, vector<8x8xf32> -> vector<8x8xf32>
    %c8_65 = arith.constant 8 : index
    %c16_66 = arith.constant 16 : index
    %176 = vector.load %arg15[%c8_65, %c16_66] : memref<16x32xf32, #tpu.memory_space<vmem>>, vector<8x8xf32>
    tpu.vector_store %arg15[%c8_65, %c16_66], %175 {strides = array<i32>} : memref<16x32xf32, #tpu.memory_space<vmem>>, vector<8x8xf32>,
    %177 = vector.extract_strided_slice %6 {offsets = [8, 24], sizes = [8, 8], strides = [1, 1]} : vector<16x96xf32> to vector<8x8xf32>
    %178 = vector.extract_strided_slice %6 {offsets = [8, 56], sizes = [8, 8], strides = [1, 1]} : vector<16x96xf32> to vector<8x8xf32>
    %179 = vector.extract_strided_slice %6 {offsets = [8, 88], sizes = [8, 8], strides = [1, 1]} : vector<16x96xf32> to vector<8x8xf32>
    %cst_67 = arith.constant dense<0.000000e+00> : vector<8x8xf32>
    %180 = tpu.matmul %177, %178, %cst_67 {dimension_numbers = #tpu.dot_dimension_numbers<[1], [1], [0], [0], [0, 0, 1, 0], [], []>} : vector<8x8xf32>, vector<8x8xf32>, vector<8x8xf32> -> vector<8x8xf32>
    %cst_68 = arith.constant 0.353553385 : f32
    %181 = vector.broadcast %cst_68 : f32 to vector<8x8xf32>
    %182 = arith.mulf %180, %181 : vector<8x8xf32>
    %cst_69 = arith.constant 0.000000e+00 : f32
    %183 = vector.broadcast %cst_69 : f32 to vector<1x8xf32>
    %184 = arith.cmpf ogt, %104, %183 : vector<1x8xf32>
    %cst_70 = arith.constant -1.000000e+09 : f32
    %185 = vector.shape_cast %184 : vector<1x8xi1> to vector<1x8xi1>
    %186 = vector.broadcast %185 : vector<1x8xi1> to vector<8x8xi1>
    %187 = vector.broadcast %cst_70 : f32 to vector<8x8xf32>
    %188 = arith.select %186, %182, %187 : vector<8x8xi1>, vector<8x8xf32>
    %cst_71 = arith.constant dense<0xFF800000> : vector<8xf32>
    %189 = vector.multi_reduction <maximumf>, %188, %cst_71 [1] : vector<8x8xf32> to vector<8xf32>
    %190 = vector.shape_cast %189 : vector<8xf32> to vector<8x1xf32>
    %191 = vector.broadcast %190 : vector<8x1xf32> to vector<8x8xf32>
    %192 = arith.subf %188, %191 : vector<8x8xf32>
    %193 = math.exp %192 : vector<8x8xf32>
    %cst_72 = arith.constant dense<0.000000e+00> : vector<8xf32>
    %194 = vector.multi_reduction <add>, %193, %cst_72 [1] : vector<8x8xf32> to vector<8xf32>
    %195 = vector.shape_cast %194 : vector<8xf32> to vector<8x1xf32>
    %196 = tpu.reciprocal %195 : vector<8x1xf32> -> vector<8x1xf32>
    %197 = vector.broadcast %196 : vector<8x1xf32> to vector<8x8xf32>
    %198 = arith.mulf %193, %197 : vector<8x8xf32>
    %cst_73 = arith.constant dense<0.000000e+00> : vector<8x8xf32>
    %199 = tpu.matmul %198, %179, %cst_73 {dimension_numbers = #tpu.dot_dimension_numbers<[1], [0], [0], [1], [0, 0, 1, 1], [], []>} : vector<8x8xf32>, vector<8x8xf32>, vector<8x8xf32> -> vector<8x8xf32>
    %c8_74 = arith.constant 8 : index
    %c24_75 = arith.constant 24 : index
    %200 = vector.load %arg15[%c8_74, %c24_75] : memref<16x32xf32, #tpu.memory_space<vmem>>, vector<8x8xf32>
    tpu.vector_store %arg15[%c8_74, %c24_75], %199 {strides = array<i32>} : memref<16x32xf32, #tpu.memory_space<vmem>>, vector<8x8xf32>,
    %c0_76 = arith.constant 0 : index
    %c0_77 = arith.constant 0 : index
    %201 = vector.load %arg15[%c0_76, %c0_77] : memref<16x32xf32, #tpu.memory_space<vmem>>, vector<16x32xf32>
    %c0_78 = arith.constant 0 : index
    %c0_79 = arith.constant 0 : index
    %202 = vector.load %arg4[%c0_78, %c0_79] : memref<32x32xf32, #tpu.memory_space<vmem>>, vector<32x32xf32>
    %cst_80 = arith.constant dense<0.000000e+00> : vector<16x32xf32>
    %203 = tpu.matmul %201, %202, %cst_80 {dimension_numbers = #tpu.dot_dimension_numbers<[1], [0], [0], [1], [0, 0, 1, 1], [], []>} : vector<16x32xf32>, vector<32x32xf32>, vector<16x32xf32> -> vector<16x32xf32>
    %c0_81 = arith.constant 0 : index
    %c0_82 = arith.constant 0 : index
    %204 = vector.load %arg5[%c0_81, %c0_82] : memref<1x32xf32, #tpu.memory_space<vmem>>, vector<1x32xf32>
    %205 = vector.broadcast %204 : vector<1x32xf32> to vector<16x32xf32>
    %206 = arith.addf %203, %205 : vector<16x32xf32>
    %c0_83 = arith.constant 0 : index
    %c0_84 = arith.constant 0 : index
    %207 = vector.load %arg6[%c0_83, %c0_84] : memref<1x32xf32, #tpu.memory_space<vmem>>, vector<1x32xf32>
    %c0_85 = arith.constant 0 : index
    %c0_86 = arith.constant 0 : index
    %208 = vector.load %arg7[%c0_85, %c0_86] : memref<1x32xf32, #tpu.memory_space<vmem>>, vector<1x32xf32>
    %209 = arith.addf %0, %206 : vector<16x32xf32>
    %cst_87 = arith.constant dense<0.000000e+00> : vector<16xf32>
    %210 = vector.multi_reduction <add>, %209, %cst_87 [1] : vector<16x32xf32> to vector<16xf32>
    %211 = vector.shape_cast %210 : vector<16xf32> to vector<16x1xf32>
    %cst_88 = arith.constant 3.200000e+01 : f32
    %212 = vector.broadcast %cst_88 : f32 to vector<16x1xf32>
    %213 = arith.divf %211, %212 : vector<16x1xf32>
    %214 = vector.broadcast %213 : vector<16x1xf32> to vector<16x32xf32>
    %215 = arith.subf %209, %214 : vector<16x32xf32>
    %216 = arith.mulf %215, %215 : vector<16x32xf32>
    %cst_89 = arith.constant dense<0.000000e+00> : vector<16xf32>
    %217 = vector.multi_reduction <add>, %216, %cst_89 [1] : vector<16x32xf32> to vector<16xf32>
    %218 = vector.shape_cast %217 : vector<16xf32> to vector<16x1xf32>
    %cst_90 = arith.constant 0.0322580636 : f32
    %219 = vector.broadcast %cst_90 : f32 to vector<16x1xf32>
    %220 = arith.mulf %218, %219 : vector<16x1xf32>
    %221 = math.sqrt %220 : vector<16x1xf32>
    %cst_91 = arith.constant 9.99999997E-7 : f32
    %222 = vector.broadcast %cst_91 : f32 to vector<16x1xf32>
    %223 = arith.addf %221, %222 : vector<16x1xf32>
    %224 = tpu.reciprocal %223 : vector<16x1xf32> -> vector<16x1xf32>
    %225 = vector.broadcast %207 : vector<1x32xf32> to vector<16x32xf32>
    %226 = arith.mulf %225, %215 : vector<16x32xf32>
    %227 = vector.broadcast %224 : vector<16x1xf32> to vector<16x32xf32>
    %228 = arith.mulf %226, %227 : vector<16x32xf32>
    %229 = vector.broadcast %208 : vector<1x32xf32> to vector<16x32xf32>
    %230 = arith.addf %228, %229 : vector<16x32xf32>
    %c0_92 = arith.constant 0 : index
    %c0_93 = arith.constant 0 : index
    %231 = vector.load %arg8[%c0_92, %c0_93] : memref<32x64xf32, #tpu.memory_space<vmem>>, vector<32x64xf32>
    %cst_94 = arith.constant dense<0.000000e+00> : vector<16x64xf32>
    %232 = tpu.matmul %230, %231, %cst_94 {dimension_numbers = #tpu.dot_dimension_numbers<[1], [0], [0], [1], [0, 0, 1, 1], [], []>} : vector<16x32xf32>, vector<32x64xf32>, vector<16x64xf32> -> vector<16x64xf32>
    %c0_95 = arith.constant 0 : index
    %c0_96 = arith.constant 0 : index
    %233 = vector.load %arg9[%c0_95, %c0_96] : memref<1x64xf32, #tpu.memory_space<vmem>>, vector<1x64xf32>
    %234 = vector.broadcast %233 : vector<1x64xf32> to vector<16x64xf32>
    %235 = arith.addf %232, %234 : vector<16x64xf32>
    %cst_97 = arith.constant 0.000000e+00 : f32
    %236 = vector.broadcast %cst_97 : f32 to vector<16x64xf32>
    %237 = arith.maximumf %235, %236 : vector<16x64xf32>
    %c0_98 = arith.constant 0 : index
    %c0_99 = arith.constant 0 : index
    %238 = vector.load %arg10[%c0_98, %c0_99] : memref<64x32xf32, #tpu.memory_space<vmem>>, vector<64x32xf32>
    %cst_100 = arith.constant dense<0.000000e+00> : vector<16x32xf32>
    %239 = tpu.matmul %237, %238, %cst_100 {dimension_numbers = #tpu.dot_dimension_numbers<[1], [0], [0], [1], [0, 0, 1, 1], [], []>} : vector<16x64xf32>, vector<64x32xf32>, vector<16x32xf32> -> vector<16x32xf32>
    %c0_101 = arith.constant 0 : index
    %c0_102 = arith.constant 0 : index
    %240 = vector.load %arg11[%c0_101, %c0_102] : memref<1x32xf32, #tpu.memory_space<vmem>>, vector<1x32xf32>
    %241 = vector.broadcast %240 : vector<1x32xf32> to vector<16x32xf32>
    %242 = arith.addf %239, %241 : vector<16x32xf32>
    %c0_103 = arith.constant 0 : index
    %c0_104 = arith.constant 0 : index
    %243 = vector.load %arg12[%c0_103, %c0_104] : memref<1x32xf32, #tpu.memory_space<vmem>>, vector<1x32xf32>
    %c0_105 = arith.constant 0 : index
    %c0_106 = arith.constant 0 : index
    %244 = vector.load %arg13[%c0_105, %c0_106] : memref<1x32xf32, #tpu.memory_space<vmem>>, vector<1x32xf32>
    %245 = arith.addf %230, %242 : vector<16x32xf32>
    %cst_107 = arith.constant dense<0.000000e+00> : vector<16xf32>
    %246 = vector.multi_reduction <add>, %245, %cst_107 [1] : vector<16x32xf32> to vector<16xf32>
    %247 = vector.shape_cast %246 : vector<16xf32> to vector<16x1xf32>
    %cst_108 = arith.constant 3.200000e+01 : f32
    %248 = vector.broadcast %cst_108 : f32 to vector<16x1xf32>
    %249 = arith.divf %247, %248 : vector<16x1xf32>
    %250 = vector.broadcast %249 : vector<16x1xf32> to vector<16x32xf32>
    %251 = arith.subf %245, %250 : vector<16x32xf32>
    %252 = arith.mulf %251, %251 : vector<16x32xf32>
    %cst_109 = arith.constant dense<0.000000e+00> : vector<16xf32>
    %253 = vector.multi_reduction <add>, %252, %cst_109 [1] : vector<16x32xf32> to vector<16xf32>
    %254 = vector.shape_cast %253 : vector<16xf32> to vector<16x1xf32>
    %cst_110 = arith.constant 0.0322580636 : f32
    %255 = vector.broadcast %cst_110 : f32 to vector<16x1xf32>
    %256 = arith.mulf %254, %255 : vector<16x1xf32>
    %257 = math.sqrt %256 : vector<16x1xf32>
    %cst_111 = arith.constant 9.99999997E-7 : f32
    %258 = vector.broadcast %cst_111 : f32 to vector<16x1xf32>
    %259 = arith.addf %257, %258 : vector<16x1xf32>
    %260 = tpu.reciprocal %259 : vector<16x1xf32> -> vector<16x1xf32>
    %261 = vector.broadcast %243 : vector<1x32xf32> to vector<16x32xf32>
    %262 = arith.mulf %261, %251 : vector<16x32xf32>
    %263 = vector.broadcast %260 : vector<16x1xf32> to vector<16x32xf32>
    %264 = arith.mulf %262, %263 : vector<16x32xf32>
    %265 = vector.broadcast %244 : vector<1x32xf32> to vector<16x32xf32>
    %266 = arith.addf %264, %265 : vector<16x32xf32>
    %c0_112 = arith.constant 0 : index
    %c0_113 = arith.constant 0 : index
    %267 = vector.load %arg14[%c0_112, %c0_113] : memref<16x32xf32, #tpu.memory_space<vmem>>, vector<16x32xf32>
    tpu.vector_store %arg14[%c0_112, %c0_113], %266 {strides = array<i32>} : memref<16x32xf32, #tpu.memory_space<vmem>>, vector<16x32xf32>,
    return
  }
}

</mosaic_0001>

<llo_original>
// kernel: tpu_custom_call.1
$region0: #{tpu_custom_call.1}
  #allocation0 [shape = 'u32[]', space=smem, size = 0x4, offset = 0x4, fixed_abs, tag = 'smem constant byte address 0x4 - core index']
  #allocation1 [shape = 'u32[72,128]{1,0:T(1,128)}', space=vmem, size = 0x9000, scoped, tag = 'internal scratch']
  #allocation2 [shape = 'f32[16,32]{1,0:T(8,128)}', space=vmem, size = 0x2000, scoped, tag = 'scratch operand']
  %s0 = inlined_call_operand.hbm [shape: f32[16,32], index: 0, kind: input, shape index: {}]
  %s1 = inlined_call_operand.hbm [shape: f32[2,8], index: 1, kind: input, shape index: {}]
  %s2 = inlined_call_operand.vmem [shape: f32[32,96], index: 2, kind: input, shape index: {}]
  %s3 = inlined_call_operand.vmem [shape: f32[1,96], index: 3, kind: input, shape index: {}]
  %s4 = inlined_call_operand.vmem [shape: f32[32,32], index: 4, kind: input, shape index: {}]
  %s5 = inlined_call_operand.vmem [shape: f32[1,32], index: 5, kind: input, shape index: {}]
  %s6 = inlined_call_operand.vmem [shape: f32[1,32], index: 6, kind: input, shape index: {}]
  %s7 = inlined_call_operand.vmem [shape: f32[1,32], index: 7, kind: input, shape index: {}]
  %s8 = inlined_call_operand.vmem [shape: f32[32,64], index: 8, kind: input, shape index: {}]
  %s9 = inlined_call_operand.vmem [shape: f32[1,64], index: 9, kind: input, shape index: {}]
  %s10 = inlined_call_operand.vmem [shape: f32[64,32], index: 10, kind: input, shape index: {}]
  %s11 = inlined_call_operand.vmem [shape: f32[1,32], index: 11, kind: input, shape index: {}]
  %s12 = inlined_call_operand.vmem [shape: f32[1,32], index: 12, kind: input, shape index: {}]
  %s13 = inlined_call_operand.vmem [shape: f32[1,32], index: 13, kind: input, shape index: {}]
  %s14 = inlined_call_operand.hbm [shape: f32[16,32], index: 14, kind: output, shape index: {}]
  %s15 = sld [smem:[#allocation0]]
  $region74: #{tpu_custom_call.1} parent=0
    _
  %s17 = ssub.s32 1, %s15
  %s18 = scalar_select 0, %s17, %s15
  $region1: #{tpu_custom_call.1} parent=0
    #allocation3 [shape = 'u8[8192]{0}', space=vmem, size = 0x2000, scoped, tag = 'input window, operand 0, single buffered']
    #allocation4 [shape = 's32[1]{0}', space=sflag, size = 0x4, scoped, tag = 'scoped memory for tpu_custom_call.1']
    #allocation5 [shape = 's32[1]{0}', space=sflag, size = 0x4, scoped, tag = 'scoped memory for tpu_custom_call.1']
    #allocation6 [shape = 'u8[1024]{0}', space=vmem, size = 0x400, scoped, tag = 'input window, operand 1, single buffered']
    #allocation7 [shape = 's32[1]{0}', space=sflag, size = 0x4, scoped, tag = 'scoped memory for tpu_custom_call.1']
    #allocation8 [shape = 'u8[8192]{0}', space=vmem, size = 0x2000, scoped, tag = 'output window, operand 0, single buffered']
    %19 = vsyncpa [#allocation4], 0
    %20 = vsyncpa [#allocation7], 0
    %21 = vsyncpa [#allocation5], 0
    // Predicated region
    $region2: #{tpu_custom_call.1} parent=1 // pred_check
      _
    $region3: #{tpu_custom_call.1} parent=1 // pred_check_branch
      %23 = sbr.rel (0) target = $region5
    $region4: #{tpu_custom_call.1} parent=1 // pred_region
      %25 = vsyncadd [#allocation4], 0
      %s26 = sshll.u32 %s0, 4
      %s27 = int_to_ptr.hbm [resolvable:$true] %s26
      %s28 = sshll.u32 [#allocation3], 4
      %s29 = int_to_ptr.vmem [resolvable:$true] %s28
      %34 = dma.hbm_to_vmem [thread:$0]  %s27, 256, %s29, [#allocation4], 128, 128, 8
    $region5: #{tpu_custom_call.1} parent=1 // pred_fallthru
      _
    // Predicated region
    $region6: #{tpu_custom_call.1} parent=1 // pred_check
      _
    $region7: #{tpu_custom_call.1} parent=1 // pred_check_branch
      %36 = sbr.rel (0) target = $region9
    $region8: #{tpu_custom_call.1} parent=1 // pred_region
      %38 = vsyncadd [#allocation7], 0
      %s40 = sshll.u32 %s1, 4
      %s41 = int_to_ptr.hbm [resolvable:$true] %s40
      %s42 = sshll.u32 [#allocation6], 4
      %s43 = int_to_ptr.vmem [resolvable:$true] %s42
      %45 = dma.hbm_to_vmem [thread:$0]  %s41, 32, %s43, [#allocation7]
    $region9: #{tpu_custom_call.1} parent=1 // pred_fallthru
      _
    // Predicated region
    $region10: #{tpu_custom_call.1} parent=1 // pred_check
      _
    $region11: #{tpu_custom_call.1} parent=1 // pred_check_branch
      %47 = sbr.rel (0) target = $region13
    $region12: #{tpu_custom_call.1} parent=1 // pred_region
      _
    $region13: #{tpu_custom_call.1} parent=1 // pred_fallthru
      _
    // Predicated region
    $region14: #{tpu_custom_call.1} parent=1 // pred_check
      _
    $region15: #{tpu_custom_call.1} parent=1 // pred_check_branch
      %49 = sbr.rel (0) target = $region17
    $region16: #{tpu_custom_call.1} parent=1 // pred_region
      _
    $region17: #{tpu_custom_call.1} parent=1 // pred_fallthru
      _
    // Predicated region
    $region18: #{tpu_custom_call.1} parent=1 // pred_check
      _
    $region19: #{tpu_custom_call.1} parent=1 // pred_check_branch
      %51 = sbr.rel (0) target = $region21
    $region20: #{tpu_custom_call.1} parent=1 // pred_region
      _
    $region21: #{tpu_custom_call.1} parent=1 // pred_fallthru
      _
    // Predicated region
    $region22: #{tpu_custom_call.1} parent=1 // pred_check
      _
    $region23: #{tpu_custom_call.1} parent=1 // pred_check_branch
      %53 = sbr.rel (0) target = $region25
    $region24: #{tpu_custom_call.1} parent=1 // pred_region
      _
    $region25: #{tpu_custom_call.1} parent=1 // pred_fallthru
      _
    // Predicated region
    $region26: #{tpu_custom_call.1} parent=1 // pred_check
      _
    $region27: #{tpu_custom_call.1} parent=1 // pred_check_branch
      %55 = sbr.rel (0) target = $region29
    $region28: #{tpu_custom_call.1} parent=1 // pred_region
      _
    $region29: #{tpu_custom_call.1} parent=1 // pred_fallthru
      _
    // Predicated region
    $region30: #{tpu_custom_call.1} parent=1 // pred_check
      _
    $region31: #{tpu_custom_call.1} parent=1 // pred_check_branch
      %57 = sbr.rel (0) target = $region33
    $region32: #{tpu_custom_call.1} parent=1 // pred_region
      _
    $region33: #{tpu_custom_call.1} parent=1 // pred_fallthru
      _
    // Predicated region
    $region34: #{tpu_custom_call.1} parent=1 // pred_check
      _
    $region35: #{tpu_custom_call.1} parent=1 // pred_check_branch
      %59 = sbr.rel (0) target = $region37
    $region36: #{tpu_custom_call.1} parent=1 // pred_region
      _
    $region37: #{tpu_custom_call.1} parent=1 // pred_fallthru
      _
    // Predicated region
    $region38: #{tpu_custom_call.1} parent=1 // pred_check
      _
    $region39: #{tpu_custom_call.1} parent=1 // pred_check_branch
      %61 = sbr.rel (0) target = $region41
    $region40: #{tpu_custom_call.1} parent=1 // pred_region
      _
    $region41: #{tpu_custom_call.1} parent=1 // pred_fallthru
      _
    // Predicated region
    $region42: #{tpu_custom_call.1} parent=1 // pred_check
      _
    $region43: #{tpu_custom_call.1} parent=1 // pred_check_branch
      %63 = sbr.rel (0) target = $region45
    $region44: #{tpu_custom_call.1} parent=1 // pred_region
      _
    $region45: #{tpu_custom_call.1} parent=1 // pred_fallthru
      _
    // Predicated region
    $region46: #{tpu_custom_call.1} parent=1 // pred_check
      _
    $region47: #{tpu_custom_call.1} parent=1 // pred_check_branch
      %65 = sbr.rel (0) target = $region49
    $region48: #{tpu_custom_call.1} parent=1 // pred_region
      _
    $region49: #{tpu_custom_call.1} parent=1 // pred_fallthru
      _
    // Predicated region
    $region50: #{tpu_custom_call.1} parent=1 // pred_check
      _
    $region51: #{tpu_custom_call.1} parent=1 // pred_check_branch
      %67 = sbr.rel (0) target = $region53
    $region52: #{tpu_custom_call.1} parent=1 // pred_region
      _
    $region53: #{tpu_custom_call.1} parent=1 // pred_fallthru
      _
    // Predicated region
    $region54: #{tpu_custom_call.1} parent=1 // pred_check
      _
    $region55: #{tpu_custom_call.1} parent=1 // pred_check_branch
      %69 = sbr.rel (0) target = $region57
    $region56: #{tpu_custom_call.1} parent=1 // pred_region
      _
    $region57: #{tpu_custom_call.1} parent=1 // pred_fallthru
      _
    // Predicated region
    $region58: #{tpu_custom_call.1} parent=1 // pred_check
      _
    $region59: #{tpu_custom_call.1} parent=1 // pred_check_branch
      %71 = sbr.rel (0) target = $region61
    $region60: #{tpu_custom_call.1} parent=1 // pred_region
      %73 = dma.done [#allocation4], 256
    $region61: #{tpu_custom_call.1} parent=1 // pred_fallthru
      _
    // Predicated region
    $region62: #{tpu_custom_call.1} parent=1 // pred_check
      _
    $region63: #{tpu_custom_call.1} parent=1 // pred_check_branch
      %75 = sbr.rel (0) target = $region65
    $region64: #{tpu_custom_call.1} parent=1 // pred_region
      %77 = dma.done [#allocation7], 32
    $region65: #{tpu_custom_call.1} parent=1 // pred_fallthru
      _
    %v78 = vld [vmem:[#allocation3] sm:$0xff]
    %v79 = vld [vmem:[#allocation3 + $0x8] sm:$0xff]
    %v80 = vld [vmem:[#allocation6] sm:$0x3]
    %v81 = vld [vmem:[%s2] sm:$0xff]
    %v82 = vld [vmem:[%s2 + $0x8] sm:$0xff]
    %v83 = vld [vmem:[%s2 + $0x10] sm:$0xff]
    %v84 = vld [vmem:[%s2 + $0x18] sm:$0xff]
    %v85 = vld [vmem:[%s3] sm:$0x1]
    %v87 = vperm.slane %v85, 0
    %vm89 = vcmask 261120
    %v91 = vsel %vm89, %v78, 0
    %v94 = vsel %vm89, %v79, 0
    %96 = vmatpush.msra.mxu0 0.0
    %97 = vmatpush.msra.mxu0 0.0
    %98 = vmatpush.msra.mxu0 0.0
    %99 = vmatpush.msra.mxu0 0.0
    %100 = vmatpush.msra.mxu0 0.0
    %101 = vmatpush.msra.mxu0 0.0
    %102 = vmatpush.msra.mxu0 0.0
    %103 = vmatpush.msra.mxu0 0.0
    %104 = vmatpush.msra.mxu0 0.0
    %105 = vmatpush.msra.mxu0 0.0
    %106 = vmatpush.msra.mxu0 0.0
    %107 = vmatpush.msra.mxu0 0.0
    %108 = vmatpush.msra.mxu0 %v84
    %109 = vmatpush.msra.mxu0 %v83
    %110 = vmatpush.msra.mxu0 %v82
    %111 = vmatpush.msra.mxu0 %v81
    %112 = vmatmul.f32.gmra.mxu0 %v91
    %v113 = vpop.f32.mrf.mxu0
    %v114 = vadd.f32 %v87, %v113
    %115 = vmatmul.f32.gmra.mxu0 %v94
    %v116 = vpop.f32.mrf.mxu0
    %v117 = vadd.f32 %v87, %v116
    %118 = vdwg.mxu0
    %120 = vrot.lane.b32.xlu0 %v114, 96
    %v121 = vpop.permute.xlu0 %120
    %vm122 = vcmask 64512
    %v123 = vsel %vm122, %v114, 0
    %v125 = vsel %vm122, %v121, 0
    %127 = vmatpush.xpose.msra.mxu0 0.0
    %128 = vmatpush.xpose.msra.mxu0 0.0
    %129 = vmatpush.xpose.msra.mxu0 0.0
    %130 = vmatpush.xpose.msra.mxu0 0.0
    %131 = vmatpush.xpose.msra.mxu0 0.0
    %132 = vmatpush.xpose.msra.mxu0 0.0
    %133 = vmatpush.xpose.msra.mxu0 0.0
    %134 = vmatpush.xpose.msra.mxu0 0.0
    %135 = vmatpush.xpose.msra.mxu0 0.0
    %136 = vmatpush.xpose.msra.mxu0 0.0
    %137 = vmatpush.xpose.msra.mxu0 0.0
    %138 = vmatpush.xpose.msra.mxu0 0.0
    %139 = vmatpush.xpose.msra.mxu0 0.0
    %140 = vmatpush.xpose.msra.mxu0 0.0
    %141 = vmatpush.xpose.msra.mxu0 0.0
    %142 = vmatpush.xpose.msra.mxu0 %v125
    %143 = vmatmul.f32.gmra.mxu0 %v123
    %v144 = vpop.f32.mrf.mxu0
    %v145 = vadd.f32 0.0, %v144
    %146 = vdwg.mxu0
    %v147 = vmul.f32 %v145, 0.35355338
    %vm148 = vcmp.gt.f32.partialorder %v80, 0.0
    %v149 = vsel %vm148, 1, 0
    %v150 = vperm.slane %v149, 0
    %vm151 = vcmp.eq.s32.totalorder %v150, 1
    %v152 = vsel %vm151, %v147, -1e+09
    %v153 = vsel %vm122, %v152, -inf
    %154 = vmax.xlane.f32.xlu0 %v153
    %v155 = vpop.xlane.xlu0 %154
    %v156 = vsub.f32 %v152, %v155
    %v157 = vmul.f32 %v156, 1.442695
    %v158 = vpow.pop %v157
    %v159 = vsel %vm122, %v158, 0.0
    %160 = vadd.xlane.f32.xlu0 %v159
    %v161 = vpop.xlane.xlu0 %160
    %v162 = vrcp.pop %v161
    %v163 = vmul.f32 %v161, %v162
    %v164 = vsub.f32 1.0, %v163
    %v165 = vmul.f32 %v162, %v164
    %v166 = vadd.f32 %v162, %v165
    %vm167 = vweird.f32 %v161
    %vm168 = vweird.f32 %v162
    %vm169 = vmor %vm167, %vm168
    %v170 = vsel %vm169, %v162, %v166
    %v171 = vand.u32 2147483647, %v161
    %vm172 = vcmp.eq.f32.partialorder %v171, 8.507059e+37
    %v173 = vand.u32 %v161, 2147483648
    %v174 = vor.u32 1.1754944e-38, %v173
    %v175 = vsel %vm172, %v174, %v170
    %v176 = vmul.f32 %v158, %v175
    %177 = vrot.lane.b32.xlu0 %v114, 64
    %v178 = vpop.permute.xlu0 %177
    %v181 = vsel %vm122, %v176, 0
    %183 = vmatpush.msra.mxu0 0.0
    %184 = vmatpush.msra.mxu0 0.0
    %185 = vmatpush.msra.mxu0 0.0
    %186 = vmatpush.msra.mxu0 0.0
    %187 = vmatpush.msra.mxu0 0.0
    %188 = vmatpush.msra.mxu0 0.0
    %189 = vmatpush.msra.mxu0 0.0
    %190 = vmatpush.msra.mxu0 0.0
    %191 = vmatpush.msra.mxu0 0.0
    %192 = vmatpush.msra.mxu0 0.0
    %193 = vmatpush.msra.mxu0 0.0
    %194 = vmatpush.msra.mxu0 0.0
    %195 = vmatpush.msra.mxu0 0.0
    %196 = vmatpush.msra.mxu0 0.0
    %197 = vmatpush.msra.mxu0 0.0
    %198 = vmatpush.msra.mxu0 %v178
    %199 = vmatmul.f32.gmra.mxu0 %v181
    %v200 = vpop.f32.mrf.mxu0
    %v201 = vadd.f32 0.0, %v200
    %202 = vdwg.mxu0
    %203 = vst.msk [vmem:[#allocation2] sm:$0xff] %vm122, %v201
    %204 = vrot.lane.b32.xlu0 %v114, 120
    %v205 = vpop.permute.xlu0 %204
    %206 = vrot.lane.b32.xlu0 %v114, 88
    %v207 = vpop.permute.xlu0 %206
    %v208 = vsel %vm122, %v205, 0
    %v210 = vsel %vm122, %v207, 0
    %212 = vmatpush.xpose.msra.mxu0 0.0
    %213 = vmatpush.xpose.msra.mxu0 0.0
    %214 = vmatpush.xpose.msra.mxu0 0.0
    %215 = vmatpush.xpose.msra.mxu0 0.0
    %216 = vmatpush.xpose.msra.mxu0 0.0
    %217 = vmatpush.xpose.msra.mxu0 0.0
    %218 = vmatpush.xpose.msra.mxu0 0.0
    %219 = vmatpush.xpose.msra.mxu0 0.0
    %220 = vmatpush.xpose.msra.mxu0 0.0
    %221 = vmatpush.xpose.msra.mxu0 0.0
    %222 = vmatpush.xpose.msra.mxu0 0.0
    %223 = vmatpush.xpose.msra.mxu0 0.0
    %224 = vmatpush.xpose.msra.mxu0 0.0
    %225 = vmatpush.xpose.msra.mxu0 0.0
    %226 = vmatpush.xpose.msra.mxu0 0.0
    %227 = vmatpush.xpose.msra.mxu0 %v210
    %228 = vmatmul.f32.gmra.mxu0 %v208
    %v229 = vpop.f32.mrf.mxu0
    %v230 = vadd.f32 0.0, %v229
    %231 = vdwg.mxu0
    %v232 = vmul.f32 %v230, 0.35355338
    %v233 = vsel %vm151, %v232, -1e+09
    %v234 = vsel %vm122, %v233, -inf
    %235 = vmax.xlane.f32.xlu0 %v234
    %v236 = vpop.xlane.xlu0 %235
    %v237 = vsub.f32 %v233, %v236
    %v238 = vmul.f32 %v237, 1.442695
    %v239 = vpow.pop %v238
    %v240 = vsel %vm122, %v239, 0.0
    %241 = vadd.xlane.f32.xlu0 %v240
    %v242 = vpop.xlane.xlu0 %241
    %v243 = vrcp.pop %v242
    %v244 = vmul.f32 %v242, %v243
    %v245 = vsub.f32 1.0, %v244
    %v246 = vmul.f32 %v243, %v245
    %v247 = vadd.f32 %v243, %v246
    %vm248 = vweird.f32 %v242
    %vm249 = vweird.f32 %v243
    %vm250 = vmor %vm248, %vm249
    %v251 = vsel %vm250, %v243, %v247
    %v252 = vand.u32 2147483647, %v242
    %vm253 = vcmp.eq.f32.partialorder %v252, 8.507059e+37
    %v254 = vand.u32 %v242, 2147483648
    %v255 = vor.u32 1.1754944e-38, %v254
    %v256 = vsel %vm253, %v255, %v251
    %v257 = vmul.f32 %v239, %v256
    %258 = vrot.lane.b32.xlu0 %v114, 56
    %v259 = vpop.permute.xlu0 %258
    %v262 = vsel %vm122, %v257, 0
    %264 = vmatpush.msra.mxu0 0.0
    %265 = vmatpush.msra.mxu0 0.0
    %266 = vmatpush.msra.mxu0 0.0
    %267 = vmatpush.msra.mxu0 0.0
    %268 = vmatpush.msra.mxu0 0.0
    %269 = vmatpush.msra.mxu0 0.0
    %270 = vmatpush.msra.mxu0 0.0
    %271 = vmatpush.msra.mxu0 0.0
    %272 = vmatpush.msra.mxu0 0.0
    %273 = vmatpush.msra.mxu0 0.0
    %274 = vmatpush.msra.mxu0 0.0
    %275 = vmatpush.msra.mxu0 0.0
    %276 = vmatpush.msra.mxu0 0.0
    %277 = vmatpush.msra.mxu0 0.0
    %278 = vmatpush.msra.mxu0 0.0
    %279 = vmatpush.msra.mxu0 %v259
    %280 = vmatmul.f32.gmra.mxu0 %v262
    %v281 = vpop.f32.mrf.mxu0
    %v282 = vadd.f32 0.0, %v281
    %283 = vdwg.mxu0
    %285 = vrot.lane.b32.xlu0 %v282, 8
    %v286 = vpop.permute.xlu0 %285
    %vm288 = vcmask 130112
    %289 = vst.msk [vmem:[#allocation2] sm:$0xff] %vm288, %v286
    %290 = vrot.lane.b32.xlu0 %v114, 112
    %v291 = vpop.permute.xlu0 %290
    %292 = vrot.lane.b32.xlu0 %v114, 80
    %v293 = vpop.permute.xlu0 %292
    %v294 = vsel %vm122, %v291, 0
    %v296 = vsel %vm122, %v293, 0
    %298 = vmatpush.xpose.msra.mxu0 0.0
    %299 = vmatpush.xpose.msra.mxu0 0.0
    %300 = vmatpush.xpose.msra.mxu0 0.0
    %301 = vmatpush.xpose.msra.mxu0 0.0
    %302 = vmatpush.xpose.msra.mxu0 0.0
    %303 = vmatpush.xpose.msra.mxu0 0.0
    %304 = vmatpush.xpose.msra.mxu0 0.0
    %305 = vmatpush.xpose.msra.mxu0 0.0
    %306 = vmatpush.xpose.msra.mxu0 0.0
    %307 = vmatpush.xpose.msra.mxu0 0.0
    %308 = vmatpush.xpose.msra.mxu0 0.0
    %309 = vmatpush.xpose.msra.mxu0 0.0
    %310 = vmatpush.xpose.msra.mxu0 0.0
    %311 = vmatpush.xpose.msra.mxu0 0.0
    %312 = vmatpush.xpose.msra.mxu0 0.0
    %313 = vmatpush.xpose.msra.mxu0 %v296
    %314 = vmatmul.f32.gmra.mxu0 %v294
    %v315 = vpop.f32.mrf.mxu0
    %v316 = vadd.f32 0.0, %v315
    %317 = vdwg.mxu0
    %v318 = vmul.f32 %v316, 0.35355338
    %v319 = vsel %vm151, %v318, -1e+09
    %v320 = vsel %vm122, %v319, -inf
    %321 = vmax.xlane.f32.xlu0 %v320
    %v322 = vpop.xlane.xlu0 %321
    %v323 = vsub.f32 %v319, %v322
    %v324 = vmul.f32 %v323, 1.442695
    %v325 = vpow.pop %v324
    %v326 = vsel %vm122, %v325, 0.0
    %327 = vadd.xlane.f32.xlu0 %v326
    %v328 = vpop.xlane.xlu0 %327
    %v329 = vrcp.pop %v328
    %v330 = vmul.f32 %v328, %v329
    %v331 = vsub.f32 1.0, %v330
    %v332 = vmul.f32 %v329, %v331
    %v333 = vadd.f32 %v329, %v332
    %vm334 = vweird.f32 %v328
    %vm335 = vweird.f32 %v329
    %vm336 = vmor %vm334, %vm335
    %v337 = vsel %vm336, %v329, %v333
    %v338 = vand.u32 2147483647, %v328
    %vm339 = vcmp.eq.f32.partialorder %v338, 8.507059e+37
    %v340 = vand.u32 %v328, 2147483648
    %v341 = vor.u32 1.1754944e-38, %v340
    %v342 = vsel %vm339, %v341, %v337
    %v343 = vmul.f32 %v325, %v342
    %344 = vrot.lane.b32.xlu0 %v114, 48
    %v345 = vpop.permute.xlu0 %344
    %v348 = vsel %vm122, %v343, 0
    %350 = vmatpush.msra.mxu0 0.0
    %351 = vmatpush.msra.mxu0 0.0
    %352 = vmatpush.msra.mxu0 0.0
    %353 = vmatpush.msra.mxu0 0.0
    %354 = vmatpush.msra.mxu0 0.0
    %355 = vmatpush.msra.mxu0 0.0
    %356 = vmatpush.msra.mxu0 0.0
    %357 = vmatpush.msra.mxu0 0.0
    %358 = vmatpush.msra.mxu0 0.0
    %359 = vmatpush.msra.mxu0 0.0
    %360 = vmatpush.msra.mxu0 0.0
    %361 = vmatpush.msra.mxu0 0.0
    %362 = vmatpush.msra.mxu0 0.0
    %363 = vmatpush.msra.mxu0 0.0
    %364 = vmatpush.msra.mxu0 0.0
    %365 = vmatpush.msra.mxu0 %v345
    %366 = vmatmul.f32.gmra.mxu0 %v348
    %v367 = vpop.f32.mrf.mxu0
    %v368 = vadd.f32 0.0, %v367
    %369 = vdwg.mxu0
    %371 = vrot.lane.b32.xlu0 %v368, 16
    %v372 = vpop.permute.xlu0 %371
    %vm374 = vcmask 195712
    %375 = vst.msk [vmem:[#allocation2] sm:$0xff] %vm374, %v372
    %376 = vrot.lane.b32.xlu0 %v114, 104
    %v377 = vpop.permute.xlu0 %376
    %378 = vrot.lane.b32.xlu0 %v114, 72
    %v379 = vpop.permute.xlu0 %378
    %v380 = vsel %vm122, %v377, 0
    %v382 = vsel %vm122, %v379, 0
    %384 = vmatpush.xpose.msra.mxu0 0.0
    %385 = vmatpush.xpose.msra.mxu0 0.0
    %386 = vmatpush.xpose.msra.mxu0 0.0
    %387 = vmatpush.xpose.msra.mxu0 0.0
    %388 = vmatpush.xpose.msra.mxu0 0.0
    %389 = vmatpush.xpose.msra.mxu0 0.0
    %390 = vmatpush.xpose.msra.mxu0 0.0
    %391 = vmatpush.xpose.msra.mxu0 0.0
    %392 = vmatpush.xpose.msra.mxu0 0.0
    %393 = vmatpush.xpose.msra.mxu0 0.0
    %394 = vmatpush.xpose.msra.mxu0 0.0
    %395 = vmatpush.xpose.msra.mxu0 0.0
    %396 = vmatpush.xpose.msra.mxu0 0.0
    %397 = vmatpush.xpose.msra.mxu0 0.0
    %398 = vmatpush.xpose.msra.mxu0 0.0
    %399 = vmatpush.xpose.msra.mxu0 %v382
    %400 = vmatmul.f32.gmra.mxu0 %v380
    %v401 = vpop.f32.mrf.mxu0
    %v402 = vadd.f32 0.0, %v401
    %403 = vdwg.mxu0
    %v404 = vmul.f32 %v402, 0.35355338
    %v405 = vsel %vm151, %v404, -1e+09
    %v406 = vsel %vm122, %v405, -inf
    %407 = vmax.xlane.f32.xlu0 %v406
    %v408 = vpop.xlane.xlu0 %407
    %v409 = vsub.f32 %v405, %v408
    %v410 = vmul.f32 %v409, 1.442695
    %v411 = vpow.pop %v410
    %v412 = vsel %vm122, %v411, 0.0
    %413 = vadd.xlane.f32.xlu0 %v412
    %v414 = vpop.xlane.xlu0 %413
    %v415 = vrcp.pop %v414
    %v416 = vmul.f32 %v414, %v415
    %v417 = vsub.f32 1.0, %v416
    %v418 = vmul.f32 %v415, %v417
    %v419 = vadd.f32 %v415, %v418
    %vm420 = vweird.f32 %v414
    %vm421 = vweird.f32 %v415
    %vm422 = vmor %vm420, %vm421
    %v423 = vsel %vm422, %v415, %v419
    %v424 = vand.u32 2147483647, %v414
    %vm425 = vcmp.eq.f32.partialorder %v424, 8.507059e+37
    %v426 = vand.u32 %v414, 2147483648
    %v427 = vor.u32 1.1754944e-38, %v426
    %v428 = vsel %vm425, %v427, %v423
    %v429 = vmul.f32 %v411, %v428
    %430 = vrot.lane.b32.xlu0 %v114, 40
    %v431 = vpop.permute.xlu0 %430
    %v434 = vsel %vm122, %v429, 0
    %436 = vmatpush.msra.mxu0 0.0
    %437 = vmatpush.msra.mxu0 0.0
    %438 = vmatpush.msra.mxu0 0.0
    %439 = vmatpush.msra.mxu0 0.0
    %440 = vmatpush.msra.mxu0 0.0
    %441 = vmatpush.msra.mxu0 0.0
    %442 = vmatpush.msra.mxu0 0.0
    %443 = vmatpush.msra.mxu0 0.0
    %444 = vmatpush.msra.mxu0 0.0
    %445 = vmatpush.msra.mxu0 0.0
    %446 = vmatpush.msra.mxu0 0.0
    %447 = vmatpush.msra.mxu0 0.0
    %448 = vmatpush.msra.mxu0 0.0
    %449 = vmatpush.msra.mxu0 0.0
    %450 = vmatpush.msra.mxu0 0.0
    %451 = vmatpush.msra.mxu0 %v431
    %452 = vmatmul.f32.gmra.mxu0 %v434
    %v453 = vpop.f32.mrf.mxu0
    %v454 = vadd.f32 0.0, %v453
    %455 = vdwg.mxu0
    %457 = vrot.lane.b32.xlu0 %v454, 24
    %v458 = vpop.permute.xlu0 %457
    %vm460 = vcmask 261312
    %461 = vst.msk [vmem:[#allocation2] sm:$0xff] %vm460, %v458
    %463 = vrot.lane.b32.xlu0 %v117, 96
    %v464 = vpop.permute.xlu0 %463
    %v465 = vsel %vm122, %v117, 0
    %v467 = vsel %vm122, %v464, 0
    %469 = vmatpush.xpose.msra.mxu0 0.0
    %470 = vmatpush.xpose.msra.mxu0 0.0
    %471 = vmatpush.xpose.msra.mxu0 0.0
    %472 = vmatpush.xpose.msra.mxu0 0.0
    %473 = vmatpush.xpose.msra.mxu0 0.0
    %474 = vmatpush.xpose.msra.mxu0 0.0
    %475 = vmatpush.xpose.msra.mxu0 0.0
    %476 = vmatpush.xpose.msra.mxu0 0.0
    %477 = vmatpush.xpose.msra.mxu0 0.0
    %478 = vmatpush.xpose.msra.mxu0 0.0
    %479 = vmatpush.xpose.msra.mxu0 0.0
    %480 = vmatpush.xpose.msra.mxu0 0.0
    %481 = vmatpush.xpose.msra.mxu0 0.0
    %482 = vmatpush.xpose.msra.mxu0 0.0
    %483 = vmatpush.xpose.msra.mxu0 0.0
    %484 = vmatpush.xpose.msra.mxu0 %v467
    %485 = vmatmul.f32.gmra.mxu0 %v465
    %v486 = vpop.f32.mrf.mxu0
    %v487 = vadd.f32 0.0, %v486
    %488 = vdwg.mxu0
    %v489 = vmul.f32 %v487, 0.35355338
    %v490 = vperm.slane %v149, 1
    %vm491 = vcmp.eq.s32.totalorder %v490, 1
    %v492 = vsel %vm491, %v489, -1e+09
    %v493 = vsel %vm122, %v492, -inf
    %494 = vmax.xlane.f32.xlu0 %v493
    %v495 = vpop.xlane.xlu0 %494
    %v496 = vsub.f32 %v492, %v495
    %v497 = vmul.f32 %v496, 1.442695
    %v498 = vpow.pop %v497
    %v499 = vsel %vm122, %v498, 0.0
    %500 = vadd.xlane.f32.xlu0 %v499
    %v501 = vpop.xlane.xlu0 %500
    %v502 = vrcp.pop %v501
    %v503 = vmul.f32 %v501, %v502
    %v504 = vsub.f32 1.0, %v503
    %v505 = vmul.f32 %v502, %v504
    %v506 = vadd.f32 %v502, %v505
    %vm507 = vweird.f32 %v501
    %vm508 = vweird.f32 %v502
    %vm509 = vmor %vm507, %vm508
    %v510 = vsel %vm509, %v502, %v506
    %v511 = vand.u32 2147483647, %v501
    %vm512 = vcmp.eq.f32.partialorder %v511, 8.507059e+37
    %v513 = vand.u32 %v501, 2147483648
    %v514 = vor.u32 1.1754944e-38, %v513
    %v515 = vsel %vm512, %v514, %v510
    %v516 = vmul.f32 %v498, %v515
    %517 = vrot.lane.b32.xlu0 %v117, 64
    %v518 = vpop.permute.xlu0 %517
    %v521 = vsel %vm122, %v516, 0
    %523 = vmatpush.msra.mxu0 0.0
    %524 = vmatpush.msra.mxu0 0.0
    %525 = vmatpush.msra.mxu0 0.0
    %526 = vmatpush.msra.mxu0 0.0
    %527 = vmatpush.msra.mxu0 0.0
    %528 = vmatpush.msra.mxu0 0.0
    %529 = vmatpush.msra.mxu0 0.0
    %530 = vmatpush.msra.mxu0 0.0
    %531 = vmatpush.msra.mxu0 0.0
    %532 = vmatpush.msra.mxu0 0.0
    %533 = vmatpush.msra.mxu0 0.0
    %534 = vmatpush.msra.mxu0 0.0
    %535 = vmatpush.msra.mxu0 0.0
    %536 = vmatpush.msra.mxu0 0.0
    %537 = vmatpush.msra.mxu0 0.0
    %538 = vmatpush.msra.mxu0 %v518
    %539 = vmatmul.f32.gmra.mxu0 %v521
    %v540 = vpop.f32.mrf.mxu0
    %v541 = vadd.f32 0.0, %v540
    %542 = vdwg.mxu0
    %543 = vst.msk [vmem:[#allocation2 + $0x8] sm:$0xff] %vm122, %v541
    %544 = vrot.lane.b32.xlu0 %v117, 120
    %v545 = vpop.permute.xlu0 %544
    %546 = vrot.lane.b32.xlu0 %v117, 88
    %v547 = vpop.permute.xlu0 %546
    %v548 = vsel %vm122, %v545, 0
    %v550 = vsel %vm122, %v547, 0
    %552 = vmatpush.xpose.msra.mxu0 0.0
    %553 = vmatpush.xpose.msra.mxu0 0.0
    %554 = vmatpush.xpose.msra.mxu0 0.0
    %555 = vmatpush.xpose.msra.mxu0 0.0
    %556 = vmatpush.xpose.msra.mxu0 0.0
    %557 = vmatpush.xpose.msra.mxu0 0.0
    %558 = vmatpush.xpose.msra.mxu0 0.0
    %559 = vmatpush.xpose.msra.mxu0 0.0
    %560 = vmatpush.xpose.msra.mxu0 0.0
    %561 = vmatpush.xpose.msra.mxu0 0.0
    %562 = vmatpush.xpose.msra.mxu0 0.0
    %563 = vmatpush.xpose.msra.mxu0 0.0
    %564 = vmatpush.xpose.msra.mxu0 0.0
    %565 = vmatpush.xpose.msra.mxu0 0.0
    %566 = vmatpush.xpose.msra.mxu0 0.0
    %567 = vmatpush.xpose.msra.mxu0 %v550
    %568 = vmatmul.f32.gmra.mxu0 %v548
    %v569 = vpop.f32.mrf.mxu0
    %v570 = vadd.f32 0.0, %v569
    %571 = vdwg.mxu0
    %v572 = vmul.f32 %v570, 0.35355338
    %v573 = vsel %vm491, %v572, -1e+09
    %v574 = vsel %vm122, %v573, -inf
    %575 = vmax.xlane.f32.xlu0 %v574
    %v576 = vpop.xlane.xlu0 %575
    %v577 = vsub.f32 %v573, %v576
    %v578 = vmul.f32 %v577, 1.442695
    %v579 = vpow.pop %v578
    %v580 = vsel %vm122, %v579, 0.0
    %581 = vadd.xlane.f32.xlu0 %v580
    %v582 = vpop.xlane.xlu0 %581
    %v583 = vrcp.pop %v582
    %v584 = vmul.f32 %v582, %v583
    %v585 = vsub.f32 1.0, %v584
    %v586 = vmul.f32 %v583, %v585
    %v587 = vadd.f32 %v583, %v586
    %vm588 = vweird.f32 %v582
    %vm589 = vweird.f32 %v583
    %vm590 = vmor %vm588, %vm589
    %v591 = vsel %vm590, %v583, %v587
    %v592 = vand.u32 2147483647, %v582
    %vm593 = vcmp.eq.f32.partialorder %v592, 8.507059e+37
    %v594 = vand.u32 %v582, 2147483648
    %v595 = vor.u32 1.1754944e-38, %v594
    %v596 = vsel %vm593, %v595, %v591
    %v597 = vmul.f32 %v579, %v596
    %598 = vrot.lane.b32.xlu0 %v117, 56
    %v599 = vpop.permute.xlu0 %598
    %v602 = vsel %vm122, %v597, 0
    %604 = vmatpush.msra.mxu0 0.0
    %605 = vmatpush.msra.mxu0 0.0
    %606 = vmatpush.msra.mxu0 0.0
    %607 = vmatpush.msra.mxu0 0.0
    %608 = vmatpush.msra.mxu0 0.0
    %609 = vmatpush.msra.mxu0 0.0
    %610 = vmatpush.msra.mxu0 0.0
    %611 = vmatpush.msra.mxu0 0.0
    %612 = vmatpush.msra.mxu0 0.0
    %613 = vmatpush.msra.mxu0 0.0
    %614 = vmatpush.msra.mxu0 0.0
    %615 = vmatpush.msra.mxu0 0.0
    %616 = vmatpush.msra.mxu0 0.0
    %617 = vmatpush.msra.mxu0 0.0
    %618 = vmatpush.msra.mxu0 0.0
    %619 = vmatpush.msra.mxu0 %v599
    %620 = vmatmul.f32.gmra.mxu0 %v602
    %v621 = vpop.f32.mrf.mxu0
    %v622 = vadd.f32 0.0, %v621
    %623 = vdwg.mxu0
    %625 = vrot.lane.b32.xlu0 %v622, 8
    %v626 = vpop.permute.xlu0 %625
    %628 = vst.msk [vmem:[#allocation2 + $0x8] sm:$0xff] %vm288, %v626
    %629 = vrot.lane.b32.xlu0 %v117, 112
    %v630 = vpop.permute.xlu0 %629
    %631 = vrot.lane.b32.xlu0 %v117, 80
    %v632 = vpop.permute.xlu0 %631
    %v633 = vsel %vm122, %v630, 0
    %v635 = vsel %vm122, %v632, 0
    %637 = vmatpush.xpose.msra.mxu0 0.0
    %638 = vmatpush.xpose.msra.mxu0 0.0
    %639 = vmatpush.xpose.msra.mxu0 0.0
    %640 = vmatpush.xpose.msra.mxu0 0.0
    %641 = vmatpush.xpose.msra.mxu0 0.0
    %642 = vmatpush.xpose.msra.mxu0 0.0
    %643 = vmatpush.xpose.msra.mxu0 0.0
    %644 = vmatpush.xpose.msra.mxu0 0.0
    %645 = vmatpush.xpose.msra.mxu0 0.0
    %646 = vmatpush.xpose.msra.mxu0 0.0
    %647 = vmatpush.xpose.msra.mxu0 0.0
    %648 = vmatpush.xpose.msra.mxu0 0.0
    %649 = vmatpush.xpose.msra.mxu0 0.0
    %650 = vmatpush.xpose.msra.mxu0 0.0
    %651 = vmatpush.xpose.msra.mxu0 0.0
    %652 = vmatpush.xpose.msra.mxu0 %v635
    %653 = vmatmul.f32.gmra.mxu0 %v633
    %v654 = vpop.f32.mrf.mxu0
    %v655 = vadd.f32 0.0, %v654
    %656 = vdwg.mxu0
    %v657 = vmul.f32 %v655, 0.35355338
    %v658 = vsel %vm491, %v657, -1e+09
    %v659 = vsel %vm122, %v658, -inf
    %660 = vmax.xlane.f32.xlu0 %v659
    %v661 = vpop.xlane.xlu0 %660
    %v662 = vsub.f32 %v658, %v661
    %v663 = vmul.f32 %v662, 1.442695
    %v664 = vpow.pop %v663
    %v665 = vsel %vm122, %v664, 0.0
    %666 = vadd.xlane.f32.xlu0 %v665
    %v667 = vpop.xlane.xlu0 %666
    %v668 = vrcp.pop %v667
    %v669 = vmul.f32 %v667, %v668
    %v670 = vsub.f32 1.0, %v669
    %v671 = vmul.f32 %v668, %v670
    %v672 = vadd.f32 %v668, %v671
    %vm673 = vweird.f32 %v667
    %vm674 = vweird.f32 %v668
    %vm675 = vmor %vm673, %vm674
    %v676 = vsel %vm675, %v668, %v672
    %v677 = vand.u32 2147483647, %v667
    %vm678 = vcmp.eq.f32.partialorder %v677, 8.507059e+37
    %v679 = vand.u32 %v667, 2147483648
    %v680 = vor.u32 1.1754944e-38, %v679
    %v681 = vsel %vm678, %v680, %v676
    %v682 = vmul.f32 %v664, %v681
    %683 = vrot.lane.b32.xlu0 %v117, 48
    %v684 = vpop.permute.xlu0 %683
    %v687 = vsel %vm122, %v682, 0
    %689 = vmatpush.msra.mxu0 0.0
    %690 = vmatpush.msra.mxu0 0.0
    %691 = vmatpush.msra.mxu0 0.0
    %692 = vmatpush.msra.mxu0 0.0
    %693 = vmatpush.msra.mxu0 0.0
    %694 = vmatpush.msra.mxu0 0.0
    %695 = vmatpush.msra.mxu0 0.0
    %696 = vmatpush.msra.mxu0 0.0
    %697 = vmatpush.msra.mxu0 0.0
    %698 = vmatpush.msra.mxu0 0.0
    %699 = vmatpush.msra.mxu0 0.0
    %700 = vmatpush.msra.mxu0 0.0
    %701 = vmatpush.msra.mxu0 0.0
    %702 = vmatpush.msra.mxu0 0.0
    %703 = vmatpush.msra.mxu0 0.0
    %704 = vmatpush.msra.mxu0 %v684
    %705 = vmatmul.f32.gmra.mxu0 %v687
    %v706 = vpop.f32.mrf.mxu0
    %v707 = vadd.f32 0.0, %v706
    %708 = vdwg.mxu0
    %710 = vrot.lane.b32.xlu0 %v707, 16
    %v711 = vpop.permute.xlu0 %710
    %713 = vst.msk [vmem:[#allocation2 + $0x8] sm:$0xff] %vm374, %v711
    %714 = vrot.lane.b32.xlu0 %v117, 104
    %v715 = vpop.permute.xlu0 %714
    %716 = vrot.lane.b32.xlu0 %v117, 72
    %v717 = vpop.permute.xlu0 %716
    %v718 = vsel %vm122, %v715, 0
    %v720 = vsel %vm122, %v717, 0
    %722 = vmatpush.xpose.msra.mxu0 0.0
    %723 = vmatpush.xpose.msra.mxu0 0.0
    %724 = vmatpush.xpose.msra.mxu0 0.0
    %725 = vmatpush.xpose.msra.mxu0 0.0
    %726 = vmatpush.xpose.msra.mxu0 0.0
    %727 = vmatpush.xpose.msra.mxu0 0.0
    %728 = vmatpush.xpose.msra.mxu0 0.0
    %729 = vmatpush.xpose.msra.mxu0 0.0
    %730 = vmatpush.xpose.msra.mxu0 0.0
    %731 = vmatpush.xpose.msra.mxu0 0.0
    %732 = vmatpush.xpose.msra.mxu0 0.0
    %733 = vmatpush.xpose.msra.mxu0 0.0
    %734 = vmatpush.xpose.msra.mxu0 0.0
    %735 = vmatpush.xpose.msra.mxu0 0.0
    %736 = vmatpush.xpose.msra.mxu0 0.0
    %737 = vmatpush.xpose.msra.mxu0 %v720
    %738 = vmatmul.f32.gmra.mxu0 %v718
    %v739 = vpop.f32.mrf.mxu0
    %v740 = vadd.f32 0.0, %v739
    %741 = vdwg.mxu0
    %v742 = vmul.f32 %v740, 0.35355338
    %v743 = vsel %vm491, %v742, -1e+09
    %v744 = vsel %vm122, %v743, -inf
    %745 = vmax.xlane.f32.xlu0 %v744
    %v746 = vpop.xlane.xlu0 %745
    %v747 = vsub.f32 %v743, %v746
    %v748 = vmul.f32 %v747, 1.442695
    %v749 = vpow.pop %v748
    %v750 = vsel %vm122, %v749, 0.0
    %751 = vadd.xlane.f32.xlu0 %v750
    %v752 = vpop.xlane.xlu0 %751
    %v753 = vrcp.pop %v752
    %v754 = vmul.f32 %v752, %v753
    %v755 = vsub.f32 1.0, %v754
    %v756 = vmul.f32 %v753, %v755
    %v757 = vadd.f32 %v753, %v756
    %vm758 = vweird.f32 %v752
    %vm759 = vweird.f32 %v753
    %vm760 = vmor %vm758, %vm759
    %v761 = vsel %vm760, %v753, %v757
    %v762 = vand.u32 2147483647, %v752
    %vm763 = vcmp.eq.f32.partialorder %v762, 8.507059e+37
    %v764 = vand.u32 %v752, 2147483648
    %v765 = vor.u32 1.1754944e-38, %v764
    %v766 = vsel %vm763, %v765, %v761
    %v767 = vmul.f32 %v749, %v766
    %768 = vrot.lane.b32.xlu0 %v117, 40
    %v769 = vpop.permute.xlu0 %768
    %v772 = vsel %vm122, %v767, 0
    %774 = vmatpush.msra.mxu0 0.0
    %775 = vmatpush.msra.mxu0 0.0
    %776 = vmatpush.msra.mxu0 0.0
    %777 = vmatpush.msra.mxu0 0.0
    %778 = vmatpush.msra.mxu0 0.0
    %779 = vmatpush.msra.mxu0 0.0
    %780 = vmatpush.msra.mxu0 0.0
    %781 = vmatpush.msra.mxu0 0.0
    %782 = vmatpush.msra.mxu0 0.0
    %783 = vmatpush.msra.mxu0 0.0
    %784 = vmatpush.msra.mxu0 0.0
    %785 = vmatpush.msra.mxu0 0.0
    %786 = vmatpush.msra.mxu0 0.0
    %787 = vmatpush.msra.mxu0 0.0
    %788 = vmatpush.msra.mxu0 0.0
    %789 = vmatpush.msra.mxu0 %v769
    %790 = vmatmul.f32.gmra.mxu0 %v772
    %v791 = vpop.f32.mrf.mxu0
    %v792 = vadd.f32 0.0, %v791
    %793 = vdwg.mxu0
    %795 = vrot.lane.b32.xlu0 %v792, 24
    %v796 = vpop.permute.xlu0 %795
    %798 = vst.msk [vmem:[#allocation2 + $0x8] sm:$0xff] %vm460, %v796
    %v799 = vld [vmem:[#allocation2] sm:$0xff]
    %v800 = vld [vmem:[#allocation2 + $0x8] sm:$0xff]
    %v801 = vld [vmem:[%s4] sm:$0xff]
    %v802 = vld [vmem:[%s4 + $0x8] sm:$0xff]
    %v803 = vld [vmem:[%s4 + $0x10] sm:$0xff]
    %v804 = vld [vmem:[%s4 + $0x18] sm:$0xff]
    %v805 = vld [vmem:[%s5] sm:$0x1]
    %v807 = vperm.slane %v805, 0
    %v810 = vsel %vm89, %v799, 0
    %v813 = vsel %vm89, %v800, 0
    %815 = vmatpush.msra.mxu0 0.0
    %816 = vmatpush.msra.mxu0 0.0
    %817 = vmatpush.msra.mxu0 0.0
    %818 = vmatpush.msra.mxu0 0.0
    %819 = vmatpush.msra.mxu0 0.0
    %820 = vmatpush.msra.mxu0 0.0
    %821 = vmatpush.msra.mxu0 0.0
    %822 = vmatpush.msra.mxu0 0.0
    %823 = vmatpush.msra.mxu0 0.0
    %824 = vmatpush.msra.mxu0 0.0
    %825 = vmatpush.msra.mxu0 0.0
    %826 = vmatpush.msra.mxu0 0.0
    %827 = vmatpush.msra.mxu0 %v804
    %828 = vmatpush.msra.mxu0 %v803
    %829 = vmatpush.msra.mxu0 %v802
    %830 = vmatpush.msra.mxu0 %v801
    %831 = vmatmul.f32.gmra.mxu0 %v810
    %v832 = vpop.f32.mrf.mxu0
    %v833 = vadd.f32 %v807, %v832
    %834 = vmatmul.f32.gmra.mxu0 %v813
    %v835 = vpop.f32.mrf.mxu0
    %v836 = vadd.f32 %v807, %v835
    %837 = vdwg.mxu0
    %v838 = vld [vmem:[%s6] sm:$0x1]
    %v839 = vld [vmem:[%s7] sm:$0x1]
    %v840 = vadd.f32 %v78, %v833
    %v841 = vadd.f32 %v79, %v836
    %v842 = vsel %vm89, %v840, 0.0
    %843 = vadd.xlane.f32.xlu0 %v842
    %v844 = vpop.xlane.xlu0 %843
    %v845 = vsel %vm89, %v841, 0.0
    %846 = vadd.xlane.f32.xlu0 %v845
    %v847 = vpop.xlane.xlu0 %846
    %v848 = vrcp.pop 32.0
    %v849 = vmul.f32 32.0, %v848
    %v850 = vsub.f32 1.0, %v849
    %v851 = vmul.f32 %v848, %v850
    %v852 = vadd.f32 %v848, %v851
    %vm853 = vweird.f32 %v848
    %v854 = vsel %vm853, %v848, %v852
    %v855 = vmul.f32 %v844, %v854
    %v856 = vmul.f32 %v847, %v854
    %v857 = vsub.f32 %v840, %v855
    %v858 = vsub.f32 %v841, %v856
    %v859 = vmul.f32 %v857, %v857
    %v860 = vmul.f32 %v858, %v858
    %v861 = vsel %vm89, %v859, 0.0
    %862 = vadd.xlane.f32.xlu0 %v861
    %v863 = vpop.xlane.xlu0 %862
    %v864 = vsel %vm89, %v860, 0.0
    %865 = vadd.xlane.f32.xlu0 %v864
    %v866 = vpop.xlane.xlu0 %865
    %v867 = vmul.f32 %v863, 0.032258064
    %v868 = vmul.f32 %v866, 0.032258064
    %v869 = vrsqrt.pop %v867
    %v870 = vmul.f32 %v869, %v867
    %v871 = vmul.f32 %v870, %v869
    %v872 = vmul.f32 0.5, %v871
    %v873 = vsub.f32 1.5, %v872
    %v874 = vmul.f32 %v869, %v873
    %v875 = vmul.f32 %v867, %v874
    %vm876 = vcmp.eq.f32.partialorder %v867, inf
    %v877 = vsel %vm876, %v867, %v875
    %vm878 = vcmp.eq.f32.partialorder %v867, 0.0
    %v879 = vand.u32 %v867, 2147483648
    %v880 = vsel %vm878, %v879, %v877
    %v881 = vrsqrt.pop %v868
    %v882 = vmul.f32 %v881, %v868
    %v883 = vmul.f32 %v882, %v881
    %v884 = vmul.f32 0.5, %v883
    %v885 = vsub.f32 1.5, %v884
    %v886 = vmul.f32 %v881, %v885
    %v887 = vmul.f32 %v868, %v886
    %vm888 = vcmp.eq.f32.partialorder %v868, inf
    %v889 = vsel %vm888, %v868, %v887
    %vm890 = vcmp.eq.f32.partialorder %v868, 0.0
    %v891 = vand.u32 %v868, 2147483648
    %v892 = vsel %vm890, %v891, %v889
    %v893 = vadd.f32 %v880, 1e-06
    %v894 = vadd.f32 %v892, 1e-06
    %v895 = vrcp.pop %v893
    %v896 = vmul.f32 %v893, %v895
    %v897 = vsub.f32 1.0, %v896
    %v898 = vmul.f32 %v895, %v897
    %v899 = vadd.f32 %v895, %v898
    %vm900 = vweird.f32 %v893
    %vm901 = vweird.f32 %v895
    %vm902 = vmor %vm900, %vm901
    %v903 = vsel %vm902, %v895, %v899
    %v904 = vand.u32 2147483647, %v893
    %vm905 = vcmp.eq.f32.partialorder %v904, 8.507059e+37
    %v906 = vand.u32 %v893, 2147483648
    %v907 = vor.u32 1.1754944e-38, %v906
    %v908 = vsel %vm905, %v907, %v903
    %v909 = vrcp.pop %v894
    %v910 = vmul.f32 %v894, %v909
    %v911 = vsub.f32 1.0, %v910
    %v912 = vmul.f32 %v909, %v911
    %v913 = vadd.f32 %v909, %v912
    %vm914 = vweird.f32 %v894
    %vm915 = vweird.f32 %v909
    %vm916 = vmor %vm914, %vm915
    %v917 = vsel %vm916, %v909, %v913
    %v918 = vand.u32 2147483647, %v894
    %vm919 = vcmp.eq.f32.partialorder %v918, 8.507059e+37
    %v920 = vand.u32 %v894, 2147483648
    %v921 = vor.u32 1.1754944e-38, %v920
    %v922 = vsel %vm919, %v921, %v917
    %v924 = vperm.slane %v838, 0
    %v926 = vmul.f32 %v924, %v857
    %v927 = vmul.f32 %v924, %v858
    %v928 = vmul.f32 %v926, %v908
    %v929 = vmul.f32 %v927, %v922
    %v931 = vperm.slane %v839, 0
    %v933 = vadd.f32 %v928, %v931
    %v934 = vadd.f32 %v929, %v931
    %v935 = vld [vmem:[%s8] sm:$0xff]
    %v936 = vld [vmem:[%s8 + $0x8] sm:$0xff]
    %v937 = vld [vmem:[%s8 + $0x10] sm:$0xff]
    %v938 = vld [vmem:[%s8 + $0x18] sm:$0xff]
    %v939 = vld [vmem:[%s9] sm:$0x1]
    %v941 = vperm.slane %v939, 0
    %v944 = vsel %vm89, %v933, 0
    %v947 = vsel %vm89, %v934, 0
    %949 = vmatpush.msra.mxu0 0.0
    %950 = vmatpush.msra.mxu0 0.0
    %951 = vmatpush.msra.mxu0 0.0
    %952 = vmatpush.msra.mxu0 0.0
    %953 = vmatpush.msra.mxu0 0.0
    %954 = vmatpush.msra.mxu0 0.0
    %955 = vmatpush.msra.mxu0 0.0
    %956 = vmatpush.msra.mxu0 0.0
    %957 = vmatpush.msra.mxu0 0.0
    %958 = vmatpush.msra.mxu0 0.0
    %959 = vmatpush.msra.mxu0 0.0
    %960 = vmatpush.msra.mxu0 0.0
    %961 = vmatpush.msra.mxu0 %v938
    %962 = vmatpush.msra.mxu0 %v937
    %963 = vmatpush.msra.mxu0 %v936
    %964 = vmatpush.msra.mxu0 %v935
    %965 = vmatmul.f32.gmra.mxu0 %v944
    %v966 = vpop.f32.mrf.mxu0
    %v967 = vadd.f32 %v941, %v966
    %968 = vmatmul.f32.gmra.mxu0 %v947
    %v969 = vpop.f32.mrf.mxu0
    %v970 = vadd.f32 %v941, %v969
    %971 = vdwg.mxu0
    %v972 = vmax.f32 %v967, 0.0
    %v973 = vmax.f32 %v970, 0.0
    %v974 = vld [vmem:[%s10] sm:$0xff]
    %v975 = vld [vmem:[%s10 + $0x8] sm:$0xff]
    %v976 = vld [vmem:[%s10 + $0x10] sm:$0xff]
    %v977 = vld [vmem:[%s10 + $0x18] sm:$0xff]
    %v978 = vld [vmem:[%s10 + $0x20] sm:$0xff]
    %v979 = vld [vmem:[%s10 + $0x28] sm:$0xff]
    %v980 = vld [vmem:[%s10 + $0x30] sm:$0xff]
    %v981 = vld [vmem:[%s10 + $0x38] sm:$0xff]
    %v982 = vld [vmem:[%s11] sm:$0x1]
    %v984 = vperm.slane %v982, 0
    %vm986 = vcmask 523264
    %v988 = vsel %vm986, %v972, 0
    %v991 = vsel %vm986, %v973, 0
    %993 = vmatpush.msra.mxu0 0.0
    %994 = vmatpush.msra.mxu0 0.0
    %995 = vmatpush.msra.mxu0 0.0
    %996 = vmatpush.msra.mxu0 0.0
    %997 = vmatpush.msra.mxu0 0.0
    %998 = vmatpush.msra.mxu0 0.0
    %999 = vmatpush.msra.mxu0 0.0
    %1000 = vmatpush.msra.mxu0 0.0
    %1001 = vmatpush.msra.mxu0 %v981
    %1002 = vmatpush.msra.mxu0 %v980
    %1003 = vmatpush.msra.mxu0 %v979
    %1004 = vmatpush.msra.mxu0 %v978
    %1005 = vmatpush.msra.mxu0 %v977
    %1006 = vmatpush.msra.mxu0 %v976
    %1007 = vmatpush.msra.mxu0 %v975
    %1008 = vmatpush.msra.mxu0 %v974
    %1009 = vmatmul.f32.gmra.mxu0 %v988
    %v1010 = vpop.f32.mrf.mxu0
    %v1011 = vadd.f32 %v984, %v1010
    %1012 = vmatmul.f32.gmra.mxu0 %v991
    %v1013 = vpop.f32.mrf.mxu0
    %v1014 = vadd.f32 %v984, %v1013
    %1015 = vdwg.mxu0
    %v1016 = vld [vmem:[%s12] sm:$0x1]
    %v1017 = vld [vmem:[%s13] sm:$0x1]
    %v1018 = vadd.f32 %v933, %v1011
    %v1019 = vadd.f32 %v934, %v1014
    %v1020 = vsel %vm89, %v1018, 0.0
    %1021 = vadd.xlane.f32.xlu0 %v1020
    %v1022 = vpop.xlane.xlu0 %1021
    %v1023 = vsel %vm89, %v1019, 0.0
    %1024 = vadd.xlane.f32.xlu0 %v1023
    %v1025 = vpop.xlane.xlu0 %1024
    %v1026 = vmul.f32 %v1022, %v854
    %v1027 = vmul.f32 %v1025, %v854
    %v1028 = vsub.f32 %v1018, %v1026
    %v1029 = vsub.f32 %v1019, %v1027
    %v1030 = vmul.f32 %v1028, %v1028
    %v1031 = vmul.f32 %v1029, %v1029
    %v1032 = vsel %vm89, %v1030, 0.0
    %1033 = vadd.xlane.f32.xlu0 %v1032
    %v1034 = vpop.xlane.xlu0 %1033
    %v1035 = vsel %vm89, %v1031, 0.0
    %1036 = vadd.xlane.f32.xlu0 %v1035
    %v1037 = vpop.xlane.xlu0 %1036
    %v1038 = vmul.f32 %v1034, 0.032258064
    %v1039 = vmul.f32 %v1037, 0.032258064
    %v1040 = vrsqrt.pop %v1038
    %v1041 = vmul.f32 %v1040, %v1038
    %v1042 = vmul.f32 %v1041, %v1040
    %v1043 = vmul.f32 0.5, %v1042
    %v1044 = vsub.f32 1.5, %v1043
    %v1045 = vmul.f32 %v1040, %v1044
    %v1046 = vmul.f32 %v1038, %v1045
    %vm1047 = vcmp.eq.f32.partialorder %v1038, inf
    %v1048 = vsel %vm1047, %v1038, %v1046
    %vm1049 = vcmp.eq.f32.partialorder %v1038, 0.0
    %v1050 = vand.u32 %v1038, 2147483648
    %v1051 = vsel %vm1049, %v1050, %v1048
    %v1052 = vrsqrt.pop %v1039
    %v1053 = vmul.f32 %v1052, %v1039
    %v1054 = vmul.f32 %v1053, %v1052
    %v1055 = vmul.f32 0.5, %v1054
    %v1056 = vsub.f32 1.5, %v1055
    %v1057 = vmul.f32 %v1052, %v1056
    %v1058 = vmul.f32 %v1039, %v1057
    %vm1059 = vcmp.eq.f32.partialorder %v1039, inf
    %v1060 = vsel %vm1059, %v1039, %v1058
    %vm1061 = vcmp.eq.f32.partialorder %v1039, 0.0
    %v1062 = vand.u32 %v1039, 2147483648
    %v1063 = vsel %vm1061, %v1062, %v1060
    %v1064 = vadd.f32 %v1051, 1e-06
    %v1065 = vadd.f32 %v1063, 1e-06
    %v1066 = vrcp.pop %v1064
    %v1067 = vmul.f32 %v1064, %v1066
    %v1068 = vsub.f32 1.0, %v1067
    %v1069 = vmul.f32 %v1066, %v1068
    %v1070 = vadd.f32 %v1066, %v1069
    %vm1071 = vweird.f32 %v1064
    %vm1072 = vweird.f32 %v1066
    %vm1073 = vmor %vm1071, %vm1072
    %v1074 = vsel %vm1073, %v1066, %v1070
    %v1075 = vand.u32 2147483647, %v1064
    %vm1076 = vcmp.eq.f32.partialorder %v1075, 8.507059e+37
    %v1077 = vand.u32 %v1064, 2147483648
    %v1078 = vor.u32 1.1754944e-38, %v1077
    %v1079 = vsel %vm1076, %v1078, %v1074
    %v1080 = vrcp.pop %v1065
    %v1081 = vmul.f32 %v1065, %v1080
    %v1082 = vsub.f32 1.0, %v1081
    %v1083 = vmul.f32 %v1080, %v1082
    %v1084 = vadd.f32 %v1080, %v1083
    %vm1085 = vweird.f32 %v1065
    %vm1086 = vweird.f32 %v1080
    %vm1087 = vmor %vm1085, %vm1086
    %v1088 = vsel %vm1087, %v1080, %v1084
    %v1089 = vand.u32 2147483647, %v1065
    %vm1090 = vcmp.eq.f32.partialorder %v1089, 8.507059e+37
    %v1091 = vand.u32 %v1065, 2147483648
    %v1092 = vor.u32 1.1754944e-38, %v1091
    %v1093 = vsel %vm1090, %v1092, %v1088
    %v1095 = vperm.slane %v1016, 0
    %v1097 = vmul.f32 %v1095, %v1028
    %v1098 = vmul.f32 %v1095, %v1029
    %v1099 = vmul.f32 %v1097, %v1079
    %v1100 = vmul.f32 %v1098, %v1093
    %v1102 = vperm.slane %v1017, 0
    %v1104 = vadd.f32 %v1099, %v1102
    %v1105 = vadd.f32 %v1100, %v1102
    %1106 = vst.msk [vmem:[#allocation8] sm:$0xff] %vm89, %v1104
    %1107 = vst.msk [vmem:[#allocation8 + $0x8] sm:$0xff] %vm89, %v1105
    // Predicated region
    $region66: #{tpu_custom_call.1} parent=1 // pred_check
      _
    $region67: #{tpu_custom_call.1} parent=1 // pred_check_branch
      %1109 = sbr.rel (0) target = $region69
    $region68: #{tpu_custom_call.1} parent=1 // pred_region
      %1111 = vsyncadd [#allocation5], 0
      %s1112 = sshll.u32 [#allocation8], 4
      %s1113 = int_to_ptr.vmem [resolvable:$true] %s1112
      %s1114 = sshll.u32 %s14, 4
      %s1115 = int_to_ptr.hbm [resolvable:$true] %s1114
      %1120 = dma.vmem_to_hbm [thread:$0]  %s1113, 256, %s1115, [#allocation5], 128, 128, 8
    $region69: #{tpu_custom_call.1} parent=1 // pred_fallthru
      _
    // Predicated region
    $region70: #{tpu_custom_call.1} parent=1 // pred_check
      _
    $region71: #{tpu_custom_call.1} parent=1 // pred_check_branch
      %1122 = sbr.rel (0) target = $region73
    $region72: #{tpu_custom_call.1} parent=1 // pred_region
      %1124 = dma.done [#allocation5], 256
    $region73: #{tpu_custom_call.1} parent=1 // pred_fallthru
      _
    %1125 = vsyncpa [#allocation4], 1
    %1126 = vsyncpa [#allocation7], 1
    %1127 = vsyncpa [#allocation5], 1

</llo_original>
